<compile_context>
chip_gen: v7x
topology: tpu7x:2x2x1
jax: 0.10.0
libtpu: 0.0.40
codegen_flags: <defaults>
</compile_context>

<pallas_src>
import numpy as np

import jax
import jax.numpy as jnp
from jax.experimental import pallas as pl
from jax.experimental.pallas import tpu as pltpu

BN_EPS = 1e-5

# Tiles below stay far under this on every chip (v5e/v6e: 128 MiB VMEM, v7x: 64 MiB).
_VMEM_LIMIT = 32 * 1024 * 1024
_MAX_HW_TILE = 16 * 1024          # f32, C=4  ->  256 KiB per buffer
_MAX_PLANE_TILE = 32
# Fully-fused path limits: whole (N, C, HW) activation must sit in VMEM with headroom,
# and the per-batch static unroll / VPU channel mix must stay cheap.
_FUSE_MAX_BYTES = 8 * 1024 * 1024
_FUSE_MAX_N = 8
_FUSE_MAX_C = 16


# ----------------------------------------------------------------------------
# tile selection helpers
# ----------------------------------------------------------------------------
def _pick_hw_tile(hw):
    """Largest multiple of 128 dividing hw (<= _MAX_HW_TILE); else the full dim."""
    if hw % 128 != 0:
        return hw                  # full-dim block is always legal
    best = 128
    for cand in range(128, min(hw, _MAX_HW_TILE) + 1, 128):
        if hw % cand == 0:
            best = cand
    return best


def _pick_plane_tile(p):
    """Largest divisor of p that is <= _MAX_PLANE_TILE."""
    best = 1
    for cand in range(1, min(p, _MAX_PLANE_TILE) + 1):
        if p % cand == 0:
            best = cand
    return best


# ----------------------------------------------------------------------------
# in-kernel helpers
# ----------------------------------------------------------------------------
def _channel_mix(v, w, b):
    """1x1 conv on channel-major data: out[o, m] = b[o] + sum_i w[o, i] * v[i, m].

    For small C this runs on the VPU as C broadcast-FMAs per output element
    (an (M,4)@(4,4) MXU matmul would use <4% of the MXU and pay push/pop latency).
    """
    c_in = v.shape[0]
    if c_in > 16:                                   # big channel counts -> MXU
        return jnp.dot(w, v, preferred_element_type=jnp.float32) + b
    acc = jnp.broadcast_to(b, (w.shape[0], v.shape[1]))
    for i in range(c_in):
        acc = acc + w[:, i:i + 1] * v[i:i + 1, :]
    return acc


# ----------------------------------------------------------------------------
# Kernel bodies
# ----------------------------------------------------------------------------
def _fused_resblock_kernel(x_ref, gamma_ref, beta_ref, w_ref, b_ref, o_ref):
    """Whole residual block in one shot (small-tensor fast path).

    x_ref: (N, C, HW) lane-dense in VMEM.  Three rounds of
    BN(batch stats) -> ReLU -> conv1x1, then the skip-add, all without touching HBM.
    Per-batch (C, HW) tiles are processed with the same proven 2D patterns as the
    tiled path; the batch loop is a static unroll (N <= _FUSE_MAX_N).
    """
    n, c, _ = x_ref.shape
    hw = x_ref.shape[2]
    inv_count = 1.0 / float(n * hw)
    gamma = gamma_ref[...]                      # (C, 1)
    beta = beta_ref[...]                        # (C, 1)
    w = w_ref[...]                              # (C, C)
    b = b_ref[...]                              # (C, 1)

    y = [x_ref[i] for i in range(n)]            # original input (skip connection)
    v = list(y)
    for _ in range(3):
        # per-channel batch statistics over (N, HW): lane (XLU) reductions
        s = jnp.zeros((c, 1), jnp.float32)
        q = jnp.zeros((c, 1), jnp.float32)
        for i in range(n):
            s = s + jnp.sum(v[i], axis=1, keepdims=True)
            q = q + jnp.sum(v[i] * v[i], axis=1, keepdims=True)
        mean = s * inv_count
        var = jnp.maximum(q * inv_count - mean * mean, 0.0)
        scale = gamma * jax.lax.rsqrt(var + BN_EPS)      # rsqrt -> EUP
        shift = beta - mean * scale
        # folded BN + ReLU + 1x1 conv (VPU broadcast-FMAs)
        v = [_channel_mix(jnp.maximum(v[i] * scale + shift, 0.0), w, b)
             for i in range(n)]
    for i in range(n):
        o_ref[i] = v[i] + y[i]


def _stats_kernel(x_ref, sum_ref, ssq_ref):
    """Per-channel sum / sum-of-squares over (N, HW) tiles (accumulator outputs)."""
    @pl.when((pl.program_id(0) == 0) & (pl.program_id(1) == 0))
    def _init():
        sum_ref[...] = jnp.zeros_like(sum_ref)
        ssq_ref[...] = jnp.zeros_like(ssq_ref)

    v = x_ref[0]                                          # (C, T), lane-dense
    sum_ref[...] += jnp.sum(v, axis=1, keepdims=True)
    ssq_ref[...] += jnp.sum(v * v, axis=1, keepdims=True)


def _bn_relu_conv_stats_kernel(x_ref, scale_ref, shift_ref, w_ref, b_ref,
                               o_ref, sum_ref, ssq_ref):
    """out = conv1x1(relu(x*scale + shift)); also accumulates stats of `out`
    (next layer's BN statistics) so `out` never has to be re-read from HBM."""
    @pl.when((pl.program_id(0) == 0) & (pl.program_id(1) == 0))
    def _init():
        sum_ref[...] = jnp.zeros_like(sum_ref)
        ssq_ref[...] = jnp.zeros_like(ssq_ref)

    v = x_ref[0]                                                   # (C, T)
    v = jnp.maximum(v * scale_ref[...] + shift_ref[...], 0.0)      # folded BN + ReLU
    o = _channel_mix(v, w_ref[...], b_ref[...])                    # 1x1 conv on VPU
    o_ref[0] = o
    sum_ref[...] += jnp.sum(o, axis=1, keepdims=True)
    ssq_ref[...] += jnp.sum(o * o, axis=1, keepdims=True)


def _bn_relu_conv_skip_kernel(x_ref, y_ref, scale_ref, shift_ref, w_ref, b_ref,
                              o_ref):
    """Last layer: out = conv1x1(relu(x*scale + shift)) + y  (skip connection)."""
    v = jnp.maximum(x_ref[0] * scale_ref[...] + shift_ref[...], 0.0)
    o_ref[0] = _channel_mix(v, w_ref[...], b_ref[...]) + y_ref[0]


def _upsample_kernel(x_ref, wh_ref, wwt_ref, o_ref):
    """Separable bilinear x2 on a block of Bp planes: out = Wh @ plane @ Ww^T."""
    x = x_ref[...]                        # (Bp, H, W)
    wh = wh_ref[...]                      # (OH, H)
    wwt = wwt_ref[...]                    # (W, OW)
    bp = x.shape[0]
    whb = jnp.broadcast_to(wh[None, :, :], (bp,) + wh.shape)       # (Bp, OH, H)
    t = jax.lax.dot_general(whb, x, (((2,), (1,)), ((0,), (0,))),
                            preferred_element_type=jnp.float32)    # (Bp, OH, W)
    o_ref[...] = jax.lax.dot_general(t, wwt, (((2,), (0,)), ((), ())),
                                     preferred_element_type=jnp.float32)


# ----------------------------------------------------------------------------
# pallas_call wrappers
# ----------------------------------------------------------------------------
def _small_specs(C):
    const = lambda n, t: (0, 0)
    return [
        pl.BlockSpec((C, 1), const),      # scale
        pl.BlockSpec((C, 1), const),      # shift
        pl.BlockSpec((C, C), const),      # conv weight (C_out, C_in)
        pl.BlockSpec((C, 1), const),      # conv bias
    ]


def _run_fused_resblock(x3, gamma, beta, w, b):
    N, C, HW = x3.shape
    return pl.pallas_call(
        _fused_resblock_kernel,
        out_shape=jax.ShapeDtypeStruct((N, C, HW), jnp.float32),
        compiler_params=pltpu.CompilerParams(vmem_limit_bytes=_VMEM_LIMIT),
    )(x3, gamma, beta, w, b)


def _run_stats(x3, tile):
    N, C, HW = x3.shape
    return pl.pallas_call(
        _stats_kernel,
        out_shape=(jax.ShapeDtypeStruct((C, 1), jnp.float32),
                   jax.ShapeDtypeStruct((C, 1), jnp.float32)),
        grid=(N, HW // tile),
        in_specs=[pl.BlockSpec((1, C, tile), lambda n, t: (n, 0, t))],
        out_specs=(pl.BlockSpec((C, 1), lambda n, t: (0, 0)),
                   pl.BlockSpec((C, 1), lambda n, t: (0, 0))),
        compiler_params=pltpu.CompilerParams(
            dimension_semantics=("arbitrary", "arbitrary"),
            vmem_limit_bytes=_VMEM_LIMIT),
    )(x3)


def _run_transform_stats(x3, scale, shift, w, b, tile):
    N, C, HW = x3.shape
    return pl.pallas_call(
        _bn_relu_conv_stats_kernel,
        out_shape=(jax.ShapeDtypeStruct((N, C, HW), jnp.float32),
                   jax.ShapeDtypeStruct((C, 1), jnp.float32),
                   jax.ShapeDtypeStruct((C, 1), jnp.float32)),
        grid=(N, HW // tile),
        in_specs=[pl.BlockSpec((1, C, tile), lambda n, t: (n, 0, t))]
        + _small_specs(C),
        out_specs=(pl.BlockSpec((1, C, tile), lambda n, t: (n, 0, t)),
                   pl.BlockSpec((C, 1), lambda n, t: (0, 0)),
                   pl.BlockSpec((C, 1), lambda n, t: (0, 0))),
        compiler_params=pltpu.CompilerParams(
            # stats accumulators force "arbitrary" (sequential) grid axes here
            dimension_semantics=("arbitrary", "arbitrary"),
            vmem_limit_bytes=_VMEM_LIMIT),
    )(x3, scale, shift, w, b)


def _run_transform_skip(x3, y3, scale, shift, w, b, tile):
    N, C, HW = x3.shape
    return pl.pallas_call(
        _bn_relu_conv_skip_kernel,
        out_shape=jax.ShapeDtypeStruct((N, C, HW), jnp.float32),
        grid=(N, HW // tile),
        in_specs=[pl.BlockSpec((1, C, tile), lambda n, t: (n, 0, t)),
                  pl.BlockSpec((1, C, tile), lambda n, t: (n, 0, t))]
        + _small_specs(C),
        out_specs=pl.BlockSpec((1, C, tile), lambda n, t: (n, 0, t)),
        compiler_params=pltpu.CompilerParams(
            dimension_semantics=("parallel", "parallel"),   # megacore on v7x
            vmem_limit_bytes=_VMEM_LIMIT),
    )(x3, y3, scale, shift, w, b)


def _run_upsample(planes, wh, wwt, bp):
    P, H, W = planes.shape
    OH, OW = wh.shape[0], wwt.shape[1]
    return pl.pallas_call(
        _upsample_kernel,
        out_shape=jax.ShapeDtypeStruct((P, OH, OW), jnp.float32),
        grid=(P // bp,),
        in_specs=[pl.BlockSpec((bp, H, W), lambda p: (p, 0, 0)),
                  pl.BlockSpec((OH, H), lambda p: (0, 0)),
                  pl.BlockSpec((W, OW), lambda p: (0, 0))],
        out_specs=pl.BlockSpec((bp, OH, OW), lambda p: (p, 0, 0)),
        compiler_params=pltpu.CompilerParams(
            dimension_semantics=("parallel",),
            vmem_limit_bytes=_VMEM_LIMIT),
    )(planes, wh, wwt)


# ----------------------------------------------------------------------------
# Bilinear interpolation matrix (PyTorch align_corners=False), compile-time const
# ----------------------------------------------------------------------------
def _bilinear_matrix(in_size, out_size):
    scale = in_size / out_size
    dst = np.arange(out_size, dtype=np.float64)
    src = np.maximum((dst + 0.5) * scale - 0.5, 0.0)     # PyTorch clamps negatives
    i0 = np.clip(np.floor(src).astype(np.int64), 0, in_size - 1)
    i1 = np.clip(i0 + 1, 0, in_size - 1)
    lam = src - i0
    m = np.zeros((out_size, in_size), np.float32)
    rows = np.arange(out_size)
    m[rows, i0] += (1.0 - lam).astype(np.float32)
    m[rows, i1] += lam.astype(np.float32)
    return m


def _upsample_x2(r3, N, C, H, W):
    """Bilinear x2 upsample of r3 = (N, C, H*W) via the plane-batched kernel."""
    wh = jnp.asarray(_bilinear_matrix(H, 2 * H))           # (2H, H)
    wwt = jnp.asarray(_bilinear_matrix(W, 2 * W).T)        # (W, 2W)
    planes = r3.reshape(N * C, H, W)
    bp = _pick_plane_tile(N * C)
    up = _run_upsample(planes, wh, wwt, bp)                # (N*C, 2H, 2W)
    return up.reshape(N, C, 2 * H, 2 * W)


# ----------------------------------------------------------------------------
# Full module forward - fused fast path and generic tiled path
# ----------------------------------------------------------------------------
@jax.jit
def _forward_fused(x_nchw, conv_w, conv_b, bn_gamma, bn_beta):
    N, C, H, W = x_nchw.shape
    HW = H * W
    x3 = x_nchw.reshape(N, C, HW)              # free reshape of NCHW, no transpose
    w = conv_w[:, :, 0, 0]                     # (C_out, C_in)
    b = conv_b.reshape(C, 1)
    gamma = bn_gamma.reshape(C, 1)
    beta = bn_beta.reshape(C, 1)

    r = _run_fused_resblock(x3, gamma, beta, w, b)          # single pallas_call
    return _upsample_x2(r, N, C, H, W)


@jax.jit
def _forward_generic(x_nchw, conv_w, conv_b, bn_gamma, bn_beta):
    N, C, H, W = x_nchw.shape
    HW = H * W
    tile = _pick_hw_tile(HW)

    x3 = x_nchw.reshape(N, C, HW)              # free reshape of NCHW, no transpose
    w = conv_w[:, :, 0, 0]                     # (C_out, C_in)
    b = conv_b.reshape(C, 1)
    gamma = bn_gamma.reshape(C, 1)
    beta = bn_beta.reshape(C, 1)
    count = N * HW

    def scale_shift(s, q):
        # Fold training-mode BN (biased variance) into one per-channel FMA.
        # TODO(synk): for extremely large N*H*W a Welford-style combine would be
        # preferable to the sum/sum-of-squares form used here (fp32, fine at 1e-3).
        mean = s / count
        var = jnp.maximum(q / count - mean * mean, 0.0)
        sc = gamma * jax.lax.rsqrt(var + BN_EPS)
        sh = beta - mean * sc
        return sc, sh

    # layer 1 (stats of the input need a dedicated reduction pass)
    s0, q0 = _run_stats(x3, tile)
    sc, sh = scale_shift(s0, q0)
    a1, s1, q1 = _run_transform_stats(x3, sc, sh, w, b, tile)
    # layer 2 (stats of a1 were produced by the previous pass)
    sc, sh = scale_shift(s1, q1)
    a2, s2, q2 = _run_transform_stats(a1, sc, sh, w, b, tile)
    # layer 3 + skip connection
    sc, sh = scale_shift(s2, q2)
    r = _run_transform_skip(a2, x3, sc, sh, w, b, tile)    # (N, C, HW)

    return _upsample_x2(r, N, C, H, W)


def mask_branch_forward(x_nchw, conv_w, conv_b, bn_gamma, bn_beta):
    """Dispatcher: fully-fused single-kernel residual block when the whole activation
    fits comfortably in VMEM; otherwise the tiled, pipelined multi-pass path."""
    N, C, H, W = x_nchw.shape
    nbytes = N * C * H * W * 4
    if N <= _FUSE_MAX_N and C <= _FUSE_MAX_C and nbytes <= _FUSE_MAX_BYTES:
        return _forward_fused(x_nchw, conv_w, conv_b, bn_gamma, bn_beta)
    return _forward_generic(x_nchw, conv_w, conv_b, bn_gamma, bn_beta)


# ----------------------------------------------------------------------------
# Pure-JAX reference (same math, NCHW) for the correctness check
# ----------------------------------------------------------------------------
def reference_forward(x, conv_w, conv_b, gamma, beta):
    N, C, H, W = x.shape
    w = conv_w[:, :, 0, 0]

    def bn(v):
        mean = jnp.mean(v, axis=(0, 2, 3), keepdims=True)
        var = jnp.mean((v - mean) ** 2, axis=(0, 2, 3), keepdims=True)
        return ((v - mean) / jnp.sqrt(var + BN_EPS)) * gamma.reshape(1, C, 1, 1) \
            + beta.reshape(1, C, 1, 1)

    def conv(v):
        return jnp.einsum('nchw,oc->nohw', v, w) + conv_b.reshape(1, C, 1, 1)

    y = x
    for _ in range(3):
        x = conv(jnp.maximum(bn(x), 0.0))
    x = x + y
    wh = jnp.asarray(_bilinear_matrix(H, 2 * H))
    ww = jnp.asarray(_bilinear_matrix(W, 2 * W))
    return jnp.einsum('oh,nchw,pw->ncop', wh, x, ww)


if __name__ == "__main__":
    N, C, H, W = 2, 4, 16, 16

    key = jax.random.PRNGKey(0)
    k_x, k_w, k_b, k_g, k_bt = jax.random.split(key, 5)
    x = jax.random.normal(k_x, (N, C, H, W), jnp.float32)
    conv_w = 0.3 * jax.random.normal(k_w, (C, C, 1, 1), jnp.float32)
    conv_b = 0.1 * jax.random.normal(k_b, (C,), jnp.float32)
    bn_gamma = 1.0 + 0.1 * jax.random.normal(k_g, (C,), jnp.float32)
    bn_beta = 0.1 * jax.random.normal(k_bt, (C,), jnp.float32)

    ref = jax.block_until_ready(
        reference_forward(x, conv_w, conv_b, bn_gamma, bn_beta))

    # fast (fully-fused) path — chosen by the dispatcher at this shape
    out = jax.block_until_ready(
        mask_branch_forward(x, conv_w, conv_b, bn_gamma, bn_beta))
    assert out.shape == (N, C, 2 * H, 2 * W), out.shape
    assert jnp.allclose(out, ref, rtol=1e-3, atol=1e-3), \
        float(jnp.max(jnp.abs(out - ref)))

    # generic (tiled multi-pass) path — validated as well
    out_g = jax.block_until_ready(
        _forward_generic(x, conv_w, conv_b, bn_gamma, bn_beta))
    assert jnp.allclose(out_g, ref, rtol=1e-3, atol=1e-3), \
        float(jnp.max(jnp.abs(out_g - ref)))

    print("KERNEL_OK")
</pallas_src>

<mosaic_0001>
module attributes {stable_mosaic.version = 11 : i64} {
  func.func @_fused_resblock_kernel(%arg0: memref<2x4x256xf32, #tpu.memory_space<vmem>>, %arg1: memref<4x1xf32, #tpu.memory_space<vmem>>, %arg2: memref<4x1xf32, #tpu.memory_space<vmem>>, %arg3: memref<4x4xf32, #tpu.memory_space<vmem>>, %arg4: memref<4x1xf32, #tpu.memory_space<vmem>>, %arg5: memref<2x4x256xf32, #tpu.memory_space<vmem>>) attributes {dimension_semantics = [], scalar_prefetch = 0 : i64, scratch_operands = 0 : i64, tpu.core_type = #tpu.core_type<tc>} {
    %c0 = arith.constant 0 : index
    %c0_0 = arith.constant 0 : index
    %0 = vector.load %arg1[%c0, %c0_0] : memref<4x1xf32, #tpu.memory_space<vmem>>, vector<4x1xf32>
    %c0_1 = arith.constant 0 : index
    %c0_2 = arith.constant 0 : index
    %1 = vector.load %arg2[%c0_1, %c0_2] : memref<4x1xf32, #tpu.memory_space<vmem>>, vector<4x1xf32>
    %c0_3 = arith.constant 0 : index
    %c0_4 = arith.constant 0 : index
    %2 = vector.load %arg3[%c0_3, %c0_4] : memref<4x4xf32, #tpu.memory_space<vmem>>, vector<4x4xf32>
    %c0_5 = arith.constant 0 : index
    %c0_6 = arith.constant 0 : index
    %3 = vector.load %arg4[%c0_5, %c0_6] : memref<4x1xf32, #tpu.memory_space<vmem>>, vector<4x1xf32>
    %c0_7 = arith.constant 0 : index
    %c0_8 = arith.constant 0 : index
    %c0_9 = arith.constant 0 : index
    %4 = vector.load %arg0[%c0_7, %c0_8, %c0_9] : memref<2x4x256xf32, #tpu.memory_space<vmem>>, vector<1x4x256xf32>
    %5 = vector.shape_cast %4 : vector<1x4x256xf32> to vector<4x256xf32>
    %c1 = arith.constant 1 : index
    %c0_10 = arith.constant 0 : index
    %c0_11 = arith.constant 0 : index
    %6 = vector.load %arg0[%c1, %c0_10, %c0_11] : memref<2x4x256xf32, #tpu.memory_space<vmem>>, vector<1x4x256xf32>
    %7 = vector.shape_cast %6 : vector<1x4x256xf32> to vector<4x256xf32>
    %cst = arith.constant 0.000000e+00 : f32
    %8 = vector.broadcast %cst : f32 to vector<4x1xf32>
    %cst_12 = arith.constant 0.000000e+00 : f32
    %9 = vector.broadcast %cst_12 : f32 to vector<4x1xf32>
    %cst_13 = arith.constant dense<0.000000e+00> : vector<4xf32>
    %10 = vector.multi_reduction <add>, %5, %cst_13 [1] : vector<4x256xf32> to vector<4xf32>
    %11 = vector.shape_cast %10 : vector<4xf32> to vector<4x1xf32>
    %12 = arith.addf %8, %11 : vector<4x1xf32>
    %13 = arith.mulf %5, %5 : vector<4x256xf32>
    %cst_14 = arith.constant dense<0.000000e+00> : vector<4xf32>
    %14 = vector.multi_reduction <add>, %13, %cst_14 [1] : vector<4x256xf32> to vector<4xf32>
    %15 = vector.shape_cast %14 : vector<4xf32> to vector<4x1xf32>
    %16 = arith.addf %9, %15 : vector<4x1xf32>
    %cst_15 = arith.constant dense<0.000000e+00> : vector<4xf32>
    %17 = vector.multi_reduction <add>, %7, %cst_15 [1] : vector<4x256xf32> to vector<4xf32>
    %18 = vector.shape_cast %17 : vector<4xf32> to vector<4x1xf32>
    %19 = arith.addf %12, %18 : vector<4x1xf32>
    %20 = arith.mulf %7, %7 : vector<4x256xf32>
    %cst_16 = arith.constant dense<0.000000e+00> : vector<4xf32>
    %21 = vector.multi_reduction <add>, %20, %cst_16 [1] : vector<4x256xf32> to vector<4xf32>
    %22 = vector.shape_cast %21 : vector<4xf32> to vector<4x1xf32>
    %23 = arith.addf %16, %22 : vector<4x1xf32>
    %cst_17 = arith.constant 0.001953125 : f32
    %24 = vector.broadcast %cst_17 : f32 to vector<4x1xf32>
    %25 = arith.mulf %19, %24 : vector<4x1xf32>
    %cst_18 = arith.constant 0.001953125 : f32
    %26 = vector.broadcast %cst_18 : f32 to vector<4x1xf32>
    %27 = arith.mulf %23, %26 : vector<4x1xf32>
    %28 = arith.mulf %25, %25 : vector<4x1xf32>
    %29 = arith.subf %27, %28 : vector<4x1xf32>
    %cst_19 = arith.constant 0.000000e+00 : f32
    %30 = vector.broadcast %cst_19 : f32 to vector<4x1xf32>
    %31 = arith.maximumf %29, %30 : vector<4x1xf32>
    %cst_20 = arith.constant 9.99999974E-6 : f32
    %32 = vector.broadcast %cst_20 : f32 to vector<4x1xf32>
    %33 = arith.addf %31, %32 : vector<4x1xf32>
    %34 = math.rsqrt %33 : vector<4x1xf32>
    %35 = arith.mulf %0, %34 : vector<4x1xf32>
    %36 = arith.mulf %25, %35 : vector<4x1xf32>
    %37 = arith.subf %1, %36 : vector<4x1xf32>
    %38 = vector.broadcast %35 : vector<4x1xf32> to vector<4x256xf32>
    %39 = arith.mulf %5, %38 : vector<4x256xf32>
    %40 = vector.broadcast %37 : vector<4x1xf32> to vector<4x256xf32>
    %41 = arith.addf %39, %40 : vector<4x256xf32>
    %cst_21 = arith.constant 0.000000e+00 : f32
    %42 = vector.broadcast %cst_21 : f32 to vector<4x256xf32>
    %43 = arith.maximumf %41, %42 : vector<4x256xf32>
    %44 = vector.shape_cast %3 : vector<4x1xf32> to vector<4x1xf32>
    %45 = vector.broadcast %44 : vector<4x1xf32> to vector<4x256xf32>
    %46 = vector.extract_strided_slice %2 {offsets = [0, 0], sizes = [4, 1], strides = [1, 1]} : vector<4x4xf32> to vector<4x1xf32>
    %47 = vector.extract_strided_slice %43 {offsets = [0, 0], sizes = [1, 256], strides = [1, 1]} : vector<4x256xf32> to vector<1x256xf32>
    %48 = vector.broadcast %46 : vector<4x1xf32> to vector<4x256xf32>
    %49 = vector.broadcast %47 : vector<1x256xf32> to vector<4x256xf32>
    %50 = arith.mulf %48, %49 : vector<4x256xf32>
    %51 = arith.addf %45, %50 : vector<4x256xf32>
    %52 = vector.extract_strided_slice %2 {offsets = [0, 1], sizes = [4, 1], strides = [1, 1]} : vector<4x4xf32> to vector<4x1xf32>
    %53 = vector.extract_strided_slice %43 {offsets = [1, 0], sizes = [1, 256], strides = [1, 1]} : vector<4x256xf32> to vector<1x256xf32>
    %54 = vector.broadcast %52 : vector<4x1xf32> to vector<4x256xf32>
    %55 = vector.broadcast %53 : vector<1x256xf32> to vector<4x256xf32>
    %56 = arith.mulf %54, %55 : vector<4x256xf32>
    %57 = arith.addf %51, %56 : vector<4x256xf32>
    %58 = vector.extract_strided_slice %2 {offsets = [0, 2], sizes = [4, 1], strides = [1, 1]} : vector<4x4xf32> to vector<4x1xf32>
    %59 = vector.extract_strided_slice %43 {offsets = [2, 0], sizes = [1, 256], strides = [1, 1]} : vector<4x256xf32> to vector<1x256xf32>
    %60 = vector.broadcast %58 : vector<4x1xf32> to vector<4x256xf32>
    %61 = vector.broadcast %59 : vector<1x256xf32> to vector<4x256xf32>
    %62 = arith.mulf %60, %61 : vector<4x256xf32>
    %63 = arith.addf %57, %62 : vector<4x256xf32>
    %64 = vector.extract_strided_slice %2 {offsets = [0, 3], sizes = [4, 1], strides = [1, 1]} : vector<4x4xf32> to vector<4x1xf32>
    %65 = vector.extract_strided_slice %43 {offsets = [3, 0], sizes = [1, 256], strides = [1, 1]} : vector<4x256xf32> to vector<1x256xf32>
    %66 = vector.broadcast %64 : vector<4x1xf32> to vector<4x256xf32>
    %67 = vector.broadcast %65 : vector<1x256xf32> to vector<4x256xf32>
    %68 = arith.mulf %66, %67 : vector<4x256xf32>
    %69 = arith.addf %63, %68 : vector<4x256xf32>
    %70 = vector.broadcast %35 : vector<4x1xf32> to vector<4x256xf32>
    %71 = arith.mulf %7, %70 : vector<4x256xf32>
    %72 = vector.broadcast %37 : vector<4x1xf32> to vector<4x256xf32>
    %73 = arith.addf %71, %72 : vector<4x256xf32>
    %cst_22 = arith.constant 0.000000e+00 : f32
    %74 = vector.broadcast %cst_22 : f32 to vector<4x256xf32>
    %75 = arith.maximumf %73, %74 : vector<4x256xf32>
    %76 = vector.shape_cast %3 : vector<4x1xf32> to vector<4x1xf32>
    %77 = vector.broadcast %76 : vector<4x1xf32> to vector<4x256xf32>
    %78 = vector.extract_strided_slice %2 {offsets = [0, 0], sizes = [4, 1], strides = [1, 1]} : vector<4x4xf32> to vector<4x1xf32>
    %79 = vector.extract_strided_slice %75 {offsets = [0, 0], sizes = [1, 256], strides = [1, 1]} : vector<4x256xf32> to vector<1x256xf32>
    %80 = vector.broadcast %78 : vector<4x1xf32> to vector<4x256xf32>
    %81 = vector.broadcast %79 : vector<1x256xf32> to vector<4x256xf32>
    %82 = arith.mulf %80, %81 : vector<4x256xf32>
    %83 = arith.addf %77, %82 : vector<4x256xf32>
    %84 = vector.extract_strided_slice %2 {offsets = [0, 1], sizes = [4, 1], strides = [1, 1]} : vector<4x4xf32> to vector<4x1xf32>
    %85 = vector.extract_strided_slice %75 {offsets = [1, 0], sizes = [1, 256], strides = [1, 1]} : vector<4x256xf32> to vector<1x256xf32>
    %86 = vector.broadcast %84 : vector<4x1xf32> to vector<4x256xf32>
    %87 = vector.broadcast %85 : vector<1x256xf32> to vector<4x256xf32>
    %88 = arith.mulf %86, %87 : vector<4x256xf32>
    %89 = arith.addf %83, %88 : vector<4x256xf32>
    %90 = vector.extract_strided_slice %2 {offsets = [0, 2], sizes = [4, 1], strides = [1, 1]} : vector<4x4xf32> to vector<4x1xf32>
    %91 = vector.extract_strided_slice %75 {offsets = [2, 0], sizes = [1, 256], strides = [1, 1]} : vector<4x256xf32> to vector<1x256xf32>
    %92 = vector.broadcast %90 : vector<4x1xf32> to vector<4x256xf32>
    %93 = vector.broadcast %91 : vector<1x256xf32> to vector<4x256xf32>
    %94 = arith.mulf %92, %93 : vector<4x256xf32>
    %95 = arith.addf %89, %94 : vector<4x256xf32>
    %96 = vector.extract_strided_slice %2 {offsets = [0, 3], sizes = [4, 1], strides = [1, 1]} : vector<4x4xf32> to vector<4x1xf32>
    %97 = vector.extract_strided_slice %75 {offsets = [3, 0], sizes = [1, 256], strides = [1, 1]} : vector<4x256xf32> to vector<1x256xf32>
    %98 = vector.broadcast %96 : vector<4x1xf32> to vector<4x256xf32>
    %99 = vector.broadcast %97 : vector<1x256xf32> to vector<4x256xf32>
    %100 = arith.mulf %98, %99 : vector<4x256xf32>
    %101 = arith.addf %95, %100 : vector<4x256xf32>
    %cst_23 = arith.constant 0.000000e+00 : f32
    %102 = vector.broadcast %cst_23 : f32 to vector<4x1xf32>
    %cst_24 = arith.constant 0.000000e+00 : f32
    %103 = vector.broadcast %cst_24 : f32 to vector<4x1xf32>
    %cst_25 = arith.constant dense<0.000000e+00> : vector<4xf32>
    %104 = vector.multi_reduction <add>, %69, %cst_25 [1] : vector<4x256xf32> to vector<4xf32>
    %105 = vector.shape_cast %104 : vector<4xf32> to vector<4x1xf32>
    %106 = arith.addf %102, %105 : vector<4x1xf32>
    %107 = arith.mulf %69, %69 : vector<4x256xf32>
    %cst_26 = arith.constant dense<0.000000e+00> : vector<4xf32>
    %108 = vector.multi_reduction <add>, %107, %cst_26 [1] : vector<4x256xf32> to vector<4xf32>
    %109 = vector.shape_cast %108 : vector<4xf32> to vector<4x1xf32>
    %110 = arith.addf %103, %109 : vector<4x1xf32>
    %cst_27 = arith.constant dense<0.000000e+00> : vector<4xf32>
    %111 = vector.multi_reduction <add>, %101, %cst_27 [1] : vector<4x256xf32> to vector<4xf32>
    %112 = vector.shape_cast %111 : vector<4xf32> to vector<4x1xf32>
    %113 = arith.addf %106, %112 : vector<4x1xf32>
    %114 = arith.mulf %101, %101 : vector<4x256xf32>
    %cst_28 = arith.constant dense<0.000000e+00> : vector<4xf32>
    %115 = vector.multi_reduction <add>, %114, %cst_28 [1] : vector<4x256xf32> to vector<4xf32>
    %116 = vector.shape_cast %115 : vector<4xf32> to vector<4x1xf32>
    %117 = arith.addf %110, %116 : vector<4x1xf32>
    %cst_29 = arith.constant 0.001953125 : f32
    %118 = vector.broadcast %cst_29 : f32 to vector<4x1xf32>
    %119 = arith.mulf %113, %118 : vector<4x1xf32>
    %cst_30 = arith.constant 0.001953125 : f32
    %120 = vector.broadcast %cst_30 : f32 to vector<4x1xf32>
    %121 = arith.mulf %117, %120 : vector<4x1xf32>
    %122 = arith.mulf %119, %119 : vector<4x1xf32>
    %123 = arith.subf %121, %122 : vector<4x1xf32>
    %cst_31 = arith.constant 0.000000e+00 : f32
    %124 = vector.broadcast %cst_31 : f32 to vector<4x1xf32>
    %125 = arith.maximumf %123, %124 : vector<4x1xf32>
    %cst_32 = arith.constant 9.99999974E-6 : f32
    %126 = vector.broadcast %cst_32 : f32 to vector<4x1xf32>
    %127 = arith.addf %125, %126 : vector<4x1xf32>
    %128 = math.rsqrt %127 : vector<4x1xf32>
    %129 = arith.mulf %0, %128 : vector<4x1xf32>
    %130 = arith.mulf %119, %129 : vector<4x1xf32>
    %131 = arith.subf %1, %130 : vector<4x1xf32>
    %132 = vector.broadcast %129 : vector<4x1xf32> to vector<4x256xf32>
    %133 = arith.mulf %69, %132 : vector<4x256xf32>
    %134 = vector.broadcast %131 : vector<4x1xf32> to vector<4x256xf32>
    %135 = arith.addf %133, %134 : vector<4x256xf32>
    %cst_33 = arith.constant 0.000000e+00 : f32
    %136 = vector.broadcast %cst_33 : f32 to vector<4x256xf32>
    %137 = arith.maximumf %135, %136 : vector<4x256xf32>
    %138 = vector.shape_cast %3 : vector<4x1xf32> to vector<4x1xf32>
    %139 = vector.broadcast %138 : vector<4x1xf32> to vector<4x256xf32>
    %140 = vector.extract_strided_slice %2 {offsets = [0, 0], sizes = [4, 1], strides = [1, 1]} : vector<4x4xf32> to vector<4x1xf32>
    %141 = vector.extract_strided_slice %137 {offsets = [0, 0], sizes = [1, 256], strides = [1, 1]} : vector<4x256xf32> to vector<1x256xf32>
    %142 = vector.broadcast %140 : vector<4x1xf32> to vector<4x256xf32>
    %143 = vector.broadcast %141 : vector<1x256xf32> to vector<4x256xf32>
    %144 = arith.mulf %142, %143 : vector<4x256xf32>
    %145 = arith.addf %139, %144 : vector<4x256xf32>
    %146 = vector.extract_strided_slice %2 {offsets = [0, 1], sizes = [4, 1], strides = [1, 1]} : vector<4x4xf32> to vector<4x1xf32>
    %147 = vector.extract_strided_slice %137 {offsets = [1, 0], sizes = [1, 256], strides = [1, 1]} : vector<4x256xf32> to vector<1x256xf32>
    %148 = vector.broadcast %146 : vector<4x1xf32> to vector<4x256xf32>
    %149 = vector.broadcast %147 : vector<1x256xf32> to vector<4x256xf32>
    %150 = arith.mulf %148, %149 : vector<4x256xf32>
    %151 = arith.addf %145, %150 : vector<4x256xf32>
    %152 = vector.extract_strided_slice %2 {offsets = [0, 2], sizes = [4, 1], strides = [1, 1]} : vector<4x4xf32> to vector<4x1xf32>
    %153 = vector.extract_strided_slice %137 {offsets = [2, 0], sizes = [1, 256], strides = [1, 1]} : vector<4x256xf32> to vector<1x256xf32>
    %154 = vector.broadcast %152 : vector<4x1xf32> to vector<4x256xf32>
    %155 = vector.broadcast %153 : vector<1x256xf32> to vector<4x256xf32>
    %156 = arith.mulf %154, %155 : vector<4x256xf32>
    %157 = arith.addf %151, %156 : vector<4x256xf32>
    %158 = vector.extract_strided_slice %2 {offsets = [0, 3], sizes = [4, 1], strides = [1, 1]} : vector<4x4xf32> to vector<4x1xf32>
    %159 = vector.extract_strided_slice %137 {offsets = [3, 0], sizes = [1, 256], strides = [1, 1]} : vector<4x256xf32> to vector<1x256xf32>
    %160 = vector.broadcast %158 : vector<4x1xf32> to vector<4x256xf32>
    %161 = vector.broadcast %159 : vector<1x256xf32> to vector<4x256xf32>
    %162 = arith.mulf %160, %161 : vector<4x256xf32>
    %163 = arith.addf %157, %162 : vector<4x256xf32>
    %164 = vector.broadcast %129 : vector<4x1xf32> to vector<4x256xf32>
    %165 = arith.mulf %101, %164 : vector<4x256xf32>
    %166 = vector.broadcast %131 : vector<4x1xf32> to vector<4x256xf32>
    %167 = arith.addf %165, %166 : vector<4x256xf32>
    %cst_34 = arith.constant 0.000000e+00 : f32
    %168 = vector.broadcast %cst_34 : f32 to vector<4x256xf32>
    %169 = arith.maximumf %167, %168 : vector<4x256xf32>
    %170 = vector.shape_cast %3 : vector<4x1xf32> to vector<4x1xf32>
    %171 = vector.broadcast %170 : vector<4x1xf32> to vector<4x256xf32>
    %172 = vector.extract_strided_slice %2 {offsets = [0, 0], sizes = [4, 1], strides = [1, 1]} : vector<4x4xf32> to vector<4x1xf32>
    %173 = vector.extract_strided_slice %169 {offsets = [0, 0], sizes = [1, 256], strides = [1, 1]} : vector<4x256xf32> to vector<1x256xf32>
    %174 = vector.broadcast %172 : vector<4x1xf32> to vector<4x256xf32>
    %175 = vector.broadcast %173 : vector<1x256xf32> to vector<4x256xf32>
    %176 = arith.mulf %174, %175 : vector<4x256xf32>
    %177 = arith.addf %171, %176 : vector<4x256xf32>
    %178 = vector.extract_strided_slice %2 {offsets = [0, 1], sizes = [4, 1], strides = [1, 1]} : vector<4x4xf32> to vector<4x1xf32>
    %179 = vector.extract_strided_slice %169 {offsets = [1, 0], sizes = [1, 256], strides = [1, 1]} : vector<4x256xf32> to vector<1x256xf32>
    %180 = vector.broadcast %178 : vector<4x1xf32> to vector<4x256xf32>
    %181 = vector.broadcast %179 : vector<1x256xf32> to vector<4x256xf32>
    %182 = arith.mulf %180, %181 : vector<4x256xf32>
    %183 = arith.addf %177, %182 : vector<4x256xf32>
    %184 = vector.extract_strided_slice %2 {offsets = [0, 2], sizes = [4, 1], strides = [1, 1]} : vector<4x4xf32> to vector<4x1xf32>
    %185 = vector.extract_strided_slice %169 {offsets = [2, 0], sizes = [1, 256], strides = [1, 1]} : vector<4x256xf32> to vector<1x256xf32>
    %186 = vector.broadcast %184 : vector<4x1xf32> to vector<4x256xf32>
    %187 = vector.broadcast %185 : vector<1x256xf32> to vector<4x256xf32>
    %188 = arith.mulf %186, %187 : vector<4x256xf32>
    %189 = arith.addf %183, %188 : vector<4x256xf32>
    %190 = vector.extract_strided_slice %2 {offsets = [0, 3], sizes = [4, 1], strides = [1, 1]} : vector<4x4xf32> to vector<4x1xf32>
    %191 = vector.extract_strided_slice %169 {offsets = [3, 0], sizes = [1, 256], strides = [1, 1]} : vector<4x256xf32> to vector<1x256xf32>
    %192 = vector.broadcast %190 : vector<4x1xf32> to vector<4x256xf32>
    %193 = vector.broadcast %191 : vector<1x256xf32> to vector<4x256xf32>
    %194 = arith.mulf %192, %193 : vector<4x256xf32>
    %195 = arith.addf %189, %194 : vector<4x256xf32>
    %cst_35 = arith.constant 0.000000e+00 : f32
    %196 = vector.broadcast %cst_35 : f32 to vector<4x1xf32>
    %cst_36 = arith.constant 0.000000e+00 : f32
    %197 = vector.broadcast %cst_36 : f32 to vector<4x1xf32>
    %cst_37 = arith.constant dense<0.000000e+00> : vector<4xf32>
    %198 = vector.multi_reduction <add>, %163, %cst_37 [1] : vector<4x256xf32> to vector<4xf32>
    %199 = vector.shape_cast %198 : vector<4xf32> to vector<4x1xf32>
    %200 = arith.addf %196, %199 : vector<4x1xf32>
    %201 = arith.mulf %163, %163 : vector<4x256xf32>
    %cst_38 = arith.constant dense<0.000000e+00> : vector<4xf32>
    %202 = vector.multi_reduction <add>, %201, %cst_38 [1] : vector<4x256xf32> to vector<4xf32>
    %203 = vector.shape_cast %202 : vector<4xf32> to vector<4x1xf32>
    %204 = arith.addf %197, %203 : vector<4x1xf32>
    %cst_39 = arith.constant dense<0.000000e+00> : vector<4xf32>
    %205 = vector.multi_reduction <add>, %195, %cst_39 [1] : vector<4x256xf32> to vector<4xf32>
    %206 = vector.shape_cast %205 : vector<4xf32> to vector<4x1xf32>
    %207 = arith.addf %200, %206 : vector<4x1xf32>
    %208 = arith.mulf %195, %195 : vector<4x256xf32>
    %cst_40 = arith.constant dense<0.000000e+00> : vector<4xf32>
    %209 = vector.multi_reduction <add>, %208, %cst_40 [1] : vector<4x256xf32> to vector<4xf32>
    %210 = vector.shape_cast %209 : vector<4xf32> to vector<4x1xf32>
    %211 = arith.addf %204, %210 : vector<4x1xf32>
    %cst_41 = arith.constant 0.001953125 : f32
    %212 = vector.broadcast %cst_41 : f32 to vector<4x1xf32>
    %213 = arith.mulf %207, %212 : vector<4x1xf32>
    %cst_42 = arith.constant 0.001953125 : f32
    %214 = vector.broadcast %cst_42 : f32 to vector<4x1xf32>
    %215 = arith.mulf %211, %214 : vector<4x1xf32>
    %216 = arith.mulf %213, %213 : vector<4x1xf32>
    %217 = arith.subf %215, %216 : vector<4x1xf32>
    %cst_43 = arith.constant 0.000000e+00 : f32
    %218 = vector.broadcast %cst_43 : f32 to vector<4x1xf32>
    %219 = arith.maximumf %217, %218 : vector<4x1xf32>
    %cst_44 = arith.constant 9.99999974E-6 : f32
    %220 = vector.broadcast %cst_44 : f32 to vector<4x1xf32>
    %221 = arith.addf %219, %220 : vector<4x1xf32>
    %222 = math.rsqrt %221 : vector<4x1xf32>
    %223 = arith.mulf %0, %222 : vector<4x1xf32>
    %224 = arith.mulf %213, %223 : vector<4x1xf32>
    %225 = arith.subf %1, %224 : vector<4x1xf32>
    %226 = vector.broadcast %223 : vector<4x1xf32> to vector<4x256xf32>
    %227 = arith.mulf %163, %226 : vector<4x256xf32>
    %228 = vector.broadcast %225 : vector<4x1xf32> to vector<4x256xf32>
    %229 = arith.addf %227, %228 : vector<4x256xf32>
    %cst_45 = arith.constant 0.000000e+00 : f32
    %230 = vector.broadcast %cst_45 : f32 to vector<4x256xf32>
    %231 = arith.maximumf %229, %230 : vector<4x256xf32>
    %232 = vector.shape_cast %3 : vector<4x1xf32> to vector<4x1xf32>
    %233 = vector.broadcast %232 : vector<4x1xf32> to vector<4x256xf32>
    %234 = vector.extract_strided_slice %2 {offsets = [0, 0], sizes = [4, 1], strides = [1, 1]} : vector<4x4xf32> to vector<4x1xf32>
    %235 = vector.extract_strided_slice %231 {offsets = [0, 0], sizes = [1, 256], strides = [1, 1]} : vector<4x256xf32> to vector<1x256xf32>
    %236 = vector.broadcast %234 : vector<4x1xf32> to vector<4x256xf32>
    %237 = vector.broadcast %235 : vector<1x256xf32> to vector<4x256xf32>
    %238 = arith.mulf %236, %237 : vector<4x256xf32>
    %239 = arith.addf %233, %238 : vector<4x256xf32>
    %240 = vector.extract_strided_slice %2 {offsets = [0, 1], sizes = [4, 1], strides = [1, 1]} : vector<4x4xf32> to vector<4x1xf32>
    %241 = vector.extract_strided_slice %231 {offsets = [1, 0], sizes = [1, 256], strides = [1, 1]} : vector<4x256xf32> to vector<1x256xf32>
    %242 = vector.broadcast %240 : vector<4x1xf32> to vector<4x256xf32>
    %243 = vector.broadcast %241 : vector<1x256xf32> to vector<4x256xf32>
    %244 = arith.mulf %242, %243 : vector<4x256xf32>
    %245 = arith.addf %239, %244 : vector<4x256xf32>
    %246 = vector.extract_strided_slice %2 {offsets = [0, 2], sizes = [4, 1], strides = [1, 1]} : vector<4x4xf32> to vector<4x1xf32>
    %247 = vector.extract_strided_slice %231 {offsets = [2, 0], sizes = [1, 256], strides = [1, 1]} : vector<4x256xf32> to vector<1x256xf32>
    %248 = vector.broadcast %246 : vector<4x1xf32> to vector<4x256xf32>
    %249 = vector.broadcast %247 : vector<1x256xf32> to vector<4x256xf32>
    %250 = arith.mulf %248, %249 : vector<4x256xf32>
    %251 = arith.addf %245, %250 : vector<4x256xf32>
    %252 = vector.extract_strided_slice %2 {offsets = [0, 3], sizes = [4, 1], strides = [1, 1]} : vector<4x4xf32> to vector<4x1xf32>
    %253 = vector.extract_strided_slice %231 {offsets = [3, 0], sizes = [1, 256], strides = [1, 1]} : vector<4x256xf32> to vector<1x256xf32>
    %254 = vector.broadcast %252 : vector<4x1xf32> to vector<4x256xf32>
    %255 = vector.broadcast %253 : vector<1x256xf32> to vector<4x256xf32>
    %256 = arith.mulf %254, %255 : vector<4x256xf32>
    %257 = arith.addf %251, %256 : vector<4x256xf32>
    %258 = vector.broadcast %223 : vector<4x1xf32> to vector<4x256xf32>
    %259 = arith.mulf %195, %258 : vector<4x256xf32>
    %260 = vector.broadcast %225 : vector<4x1xf32> to vector<4x256xf32>
    %261 = arith.addf %259, %260 : vector<4x256xf32>
    %cst_46 = arith.constant 0.000000e+00 : f32
    %262 = vector.broadcast %cst_46 : f32 to vector<4x256xf32>
    %263 = arith.maximumf %261, %262 : vector<4x256xf32>
    %264 = vector.shape_cast %3 : vector<4x1xf32> to vector<4x1xf32>
    %265 = vector.broadcast %264 : vector<4x1xf32> to vector<4x256xf32>
    %266 = vector.extract_strided_slice %2 {offsets = [0, 0], sizes = [4, 1], strides = [1, 1]} : vector<4x4xf32> to vector<4x1xf32>
    %267 = vector.extract_strided_slice %263 {offsets = [0, 0], sizes = [1, 256], strides = [1, 1]} : vector<4x256xf32> to vector<1x256xf32>
    %268 = vector.broadcast %266 : vector<4x1xf32> to vector<4x256xf32>
    %269 = vector.broadcast %267 : vector<1x256xf32> to vector<4x256xf32>
    %270 = arith.mulf %268, %269 : vector<4x256xf32>
    %271 = arith.addf %265, %270 : vector<4x256xf32>
    %272 = vector.extract_strided_slice %2 {offsets = [0, 1], sizes = [4, 1], strides = [1, 1]} : vector<4x4xf32> to vector<4x1xf32>
    %273 = vector.extract_strided_slice %263 {offsets = [1, 0], sizes = [1, 256], strides = [1, 1]} : vector<4x256xf32> to vector<1x256xf32>
    %274 = vector.broadcast %272 : vector<4x1xf32> to vector<4x256xf32>
    %275 = vector.broadcast %273 : vector<1x256xf32> to vector<4x256xf32>
    %276 = arith.mulf %274, %275 : vector<4x256xf32>
    %277 = arith.addf %271, %276 : vector<4x256xf32>
    %278 = vector.extract_strided_slice %2 {offsets = [0, 2], sizes = [4, 1], strides = [1, 1]} : vector<4x4xf32> to vector<4x1xf32>
    %279 = vector.extract_strided_slice %263 {offsets = [2, 0], sizes = [1, 256], strides = [1, 1]} : vector<4x256xf32> to vector<1x256xf32>
    %280 = vector.broadcast %278 : vector<4x1xf32> to vector<4x256xf32>
    %281 = vector.broadcast %279 : vector<1x256xf32> to vector<4x256xf32>
    %282 = arith.mulf %280, %281 : vector<4x256xf32>
    %283 = arith.addf %277, %282 : vector<4x256xf32>
    %284 = vector.extract_strided_slice %2 {offsets = [0, 3], sizes = [4, 1], strides = [1, 1]} : vector<4x4xf32> to vector<4x1xf32>
    %285 = vector.extract_strided_slice %263 {offsets = [3, 0], sizes = [1, 256], strides = [1, 1]} : vector<4x256xf32> to vector<1x256xf32>
    %286 = vector.broadcast %284 : vector<4x1xf32> to vector<4x256xf32>
    %287 = vector.broadcast %285 : vector<1x256xf32> to vector<4x256xf32>
    %288 = arith.mulf %286, %287 : vector<4x256xf32>
    %289 = arith.addf %283, %288 : vector<4x256xf32>
    %290 = arith.addf %257, %5 : vector<4x256xf32>
    %c0_47 = arith.constant 0 : index
    %c0_48 = arith.constant 0 : index
    %c0_49 = arith.constant 0 : index
    %291 = vector.load %arg5[%c0_47, %c0_48, %c0_49] : memref<2x4x256xf32, #tpu.memory_space<vmem>>, vector<1x4x256xf32>
    %292 = vector.shape_cast %291 : vector<1x4x256xf32> to vector<4x256xf32>
    %293 = vector.shape_cast %290 : vector<4x256xf32> to vector<1x4x256xf32>
    tpu.vector_store %arg5[%c0_47, %c0_48, %c0_49], %293 {strides = array<i32>} : memref<2x4x256xf32, #tpu.memory_space<vmem>>, vector<1x4x256xf32>,
    %294 = arith.addf %289, %7 : vector<4x256xf32>
    %c1_50 = arith.constant 1 : index
    %c0_51 = arith.constant 0 : index
    %c0_52 = arith.constant 0 : index
    %295 = vector.load %arg5[%c1_50, %c0_51, %c0_52] : memref<2x4x256xf32, #tpu.memory_space<vmem>>, vector<1x4x256xf32>
    %296 = vector.shape_cast %295 : vector<1x4x256xf32> to vector<4x256xf32>
    %297 = vector.shape_cast %294 : vector<4x256xf32> to vector<1x4x256xf32>
    tpu.vector_store %arg5[%c1_50, %c0_51, %c0_52], %297 {strides = array<i32>} : memref<2x4x256xf32, #tpu.memory_space<vmem>>, vector<1x4x256xf32>,
    return
  }
}

module attributes {stable_mosaic.version = 11 : i64} {
  func.func @_upsample_kernel(%arg0: i32, %arg1: memref<8x16x16xf32, #tpu.memory_space<vmem>>, %arg2: memref<32x16xf32, #tpu.memory_space<vmem>>, %arg3: memref<16x32xf32, #tpu.memory_space<vmem>>, %arg4: memref<8x32x32xf32, #tpu.memory_space<vmem>>) attributes {dimension_semantics = [#tpu.dimension_semantics<parallel>], iteration_bounds = array<i64: 1>, scalar_prefetch = 0 : i64, scratch_operands = 0 : i64, tpu.core_type = #tpu.core_type<tc>, window_params = [{transform_indices = @transform_0, window_bounds = array<i64: 8, 16, 16>}, {pipeline_mode = #tpu.pipeline_mode<synchronous>, transform_indices = @transform_1, window_bounds = array<i64: 32, 16>}, {pipeline_mode = #tpu.pipeline_mode<synchronous>, transform_indices = @transform_2, window_bounds = array<i64: 16, 32>}, {transform_indices = @transform_3, window_bounds = array<i64: 8, 32, 32>}]} {
    %c0 = arith.constant 0 : index
    %c0_0 = arith.constant 0 : index
    %c0_1 = arith.constant 0 : index
    %0 = vector.load %arg1[%c0, %c0_0, %c0_1] : memref<8x16x16xf32, #tpu.memory_space<vmem>>, vector<8x16x16xf32>
    %c0_2 = arith.constant 0 : index
    %c0_3 = arith.constant 0 : index
    %1 = vector.load %arg2[%c0_2, %c0_3] : memref<32x16xf32, #tpu.memory_space<vmem>>, vector<32x16xf32>
    %c0_4 = arith.constant 0 : index
    %c0_5 = arith.constant 0 : index
    %2 = vector.load %arg3[%c0_4, %c0_5] : memref<16x32xf32, #tpu.memory_space<vmem>>, vector<16x32xf32>
    %3 = vector.shape_cast %1 : vector<32x16xf32> to vector<1x32x16xf32>
    %4 = vector.shape_cast %3 : vector<1x32x16xf32> to vector<1x32x16xf32>
    %5 = vector.broadcast %4 : vector<1x32x16xf32> to vector<8x32x16xf32>
    %cst = arith.constant dense<0.000000e+00> : vector<8x32x16xf32>
    %6 = tpu.matmul %5, %0, %cst {dimension_numbers = #tpu.dot_dimension_numbers<[2], [1], [1], [2], [0, 0, 0, 1, 1, 2], [0], [0]>} : vector<8x32x16xf32>, vector<8x16x16xf32>, vector<8x32x16xf32> -> vector<8x32x16xf32>
    %cst_6 = arith.constant dense<0.000000e+00> : vector<8x32x32xf32>
    %7 = tpu.matmul %6, %2, %cst_6 {dimension_numbers = #tpu.dot_dimension_numbers<[2], [0], [0, 1], [1], [0, 0, 0, 1, 1, 1], [], []>} : vector<8x32x16xf32>, vector<16x32xf32>, vector<8x32x32xf32> -> vector<8x32x32xf32>
    %c0_7 = arith.constant 0 : index
    %c0_8 = arith.constant 0 : index
    %c0_9 = arith.constant 0 : index
    %8 = vector.load %arg4[%c0_7, %c0_8, %c0_9] : memref<8x32x32xf32, #tpu.memory_space<vmem>>, vector<8x32x32xf32>
    tpu.vector_store %arg4[%c0_7, %c0_8, %c0_9], %7 {strides = array<i32>} : memref<8x32x32xf32, #tpu.memory_space<vmem>>, vector<8x32x32xf32>,
    return
  }
  func.func @transform_0(%arg0: i32) -> (i32, i32, i32) {
    %c0_i32 = arith.constant 0 : i32
    %c0_i32_0 = arith.constant 0 : i32
    %c0_i32_1 = arith.constant 0 : i32
    return %arg0, %c0_i32, %c0_i32_0 : i32, i32, i32
  }
  func.func @transform_1(%arg0: i32) -> (i32, i32) {
    %c0_i32 = arith.constant 0 : i32
    %c0_i32_0 = arith.constant 0 : i32
    %c0_i32_1 = arith.constant 0 : i32
    return %c0_i32, %c0_i32_0 : i32, i32
  }
  func.func @transform_2(%arg0: i32) -> (i32, i32) {
    %c0_i32 = arith.constant 0 : i32
    %c0_i32_0 = arith.constant 0 : i32
    %c0_i32_1 = arith.constant 0 : i32
    return %c0_i32, %c0_i32_0 : i32, i32
  }
  func.func @transform_3(%arg0: i32) -> (i32, i32, i32) {
    %c0_i32 = arith.constant 0 : i32
    %c0_i32_0 = arith.constant 0 : i32
    %c0_i32_1 = arith.constant 0 : i32
    return %arg0, %c0_i32, %c0_i32_0 : i32, i32, i32
  }
}

</mosaic_0001>

<llo_original>
// kernel: _forward_fused.2
$region0: #{_forward_fused.2}
  #allocation0 [shape = 'u32[]', space=smem, size = 0x4, offset = 0x4, fixed_abs, tag = 'smem constant byte address 0x4 - core index']
  #allocation1 [shape = 'u32[144,128]{1,0:T(1,128)}', space=vmem, size = 0x12000, scoped, tag = 'internal scratch']
  %s0 = inlined_call_operand.vmem [shape: f32[2,4,256], index: 0, kind: input, shape index: {}]
  %s1 = inlined_call_operand.vmem [shape: f32[4,1], index: 1, kind: input, shape index: {}]
  %s2 = inlined_call_operand.vmem [shape: f32[4,1], index: 2, kind: input, shape index: {}]
  %s3 = inlined_call_operand.vmem [shape: f32[4,4], index: 3, kind: input, shape index: {}]
  %s4 = inlined_call_operand.vmem [shape: f32[4,1], index: 4, kind: input, shape index: {}]
  %s5 = inlined_call_operand.vmem [shape: f32[2,4,256], index: 5, kind: output, shape index: {}]
  %s6 = sld [smem:[#allocation0]]
  $region30: #{_forward_fused.2} parent=0
    _
  %s8 = ssub.s32 1, %s6
  %s9 = scalar_select 0, %s8, %s6
  // Predicated region
  $region2: #{_forward_fused.2} parent=0 // pred_check
    _
  $region3: #{_forward_fused.2} parent=0 // pred_check_branch
    %11 = sbr.rel (0) target = $region5
  $region4: #{_forward_fused.2} parent=0 // pred_region
    _
  $region5: #{_forward_fused.2} parent=0 // pred_fallthru
    _
  // Predicated region
  $region6: #{_forward_fused.2} parent=0 // pred_check
    _
  $region7: #{_forward_fused.2} parent=0 // pred_check_branch
    %13 = sbr.rel (0) target = $region9
  $region8: #{_forward_fused.2} parent=0 // pred_region
    _
  $region9: #{_forward_fused.2} parent=0 // pred_fallthru
    _
  // Predicated region
  $region10: #{_forward_fused.2} parent=0 // pred_check
    _
  $region11: #{_forward_fused.2} parent=0 // pred_check_branch
    %15 = sbr.rel (0) target = $region13
  $region12: #{_forward_fused.2} parent=0 // pred_region
    _
  $region13: #{_forward_fused.2} parent=0 // pred_fallthru
    _
  // Predicated region
  $region14: #{_forward_fused.2} parent=0 // pred_check
    _
  $region15: #{_forward_fused.2} parent=0 // pred_check_branch
    %17 = sbr.rel (0) target = $region17
  $region16: #{_forward_fused.2} parent=0 // pred_region
    _
  $region17: #{_forward_fused.2} parent=0 // pred_fallthru
    _
  // Predicated region
  $region18: #{_forward_fused.2} parent=0 // pred_check
    _
  $region19: #{_forward_fused.2} parent=0 // pred_check_branch
    %19 = sbr.rel (0) target = $region21
  $region20: #{_forward_fused.2} parent=0 // pred_region
    _
  $region21: #{_forward_fused.2} parent=0 // pred_fallthru
    _
  %v20 = vld [vmem:[%s1] sm:$0xf]
  %v21 = vld [vmem:[%s2] sm:$0xf]
  %v22 = vld [vmem:[%s3] sm:$0xf]
  %v23 = vld [vmem:[%s4] sm:$0xf]
  %v24 = vld [vmem:[%s0] sm:$0xff]
  %s25 = scalar_lea.vmem %s0, 8
  %v26 = vld [vmem:[%s25] sm:$0xff]
  %v28 = vcombine.high %v24, %v24
  %vm30 = vcmask 1043456
  %v31 = vsel %vm30, %v24, 0.0
  %v32 = vsel %vm30, %v28, 0.0
  %v33 = vadd.f32 %v31, %v32
  %34 = vadd.xlane.f32.xlu0 %v33
  %v35 = vpop.xlane.xlu0 %34
  %v36 = vadd.f32 %v35, 0.0
  %v37 = vmul.f32 %v24, %v24
  %v39 = vcombine.high %v37, %v37
  %v41 = vsel %vm30, %v37, 0.0
  %v42 = vsel %vm30, %v39, 0.0
  %v43 = vadd.f32 %v41, %v42
  %44 = vadd.xlane.f32.xlu0 %v43
  %v45 = vpop.xlane.xlu0 %44
  %v46 = vadd.f32 %v45, 0.0
  %v48 = vcombine.high %v26, %v26
  %v50 = vsel %vm30, %v26, 0.0
  %v51 = vsel %vm30, %v48, 0.0
  %v52 = vadd.f32 %v50, %v51
  %53 = vadd.xlane.f32.xlu0 %v52
  %v54 = vpop.xlane.xlu0 %53
  %v55 = vadd.f32 %v36, %v54
  %v56 = vmul.f32 %v26, %v26
  %v58 = vcombine.high %v56, %v56
  %v60 = vsel %vm30, %v56, 0.0
  %v61 = vsel %vm30, %v58, 0.0
  %v62 = vadd.f32 %v60, %v61
  %63 = vadd.xlane.f32.xlu0 %v62
  %v64 = vpop.xlane.xlu0 %63
  %v65 = vadd.f32 %v46, %v64
  %v66 = vmul.f32 %v55, 0.001953125
  %v67 = vmul.f32 %v65, 0.001953125
  %v68 = vmul.f32 %v66, %v66
  %v69 = vsub.f32 %v67, %v68
  %v70 = vmax.f32 %v69, 0.0
  %v71 = vadd.f32 %v70, 1e-05
  %v72 = vrsqrt.pop %v71
  %v73 = vmul.f32 %v20, %v72
  %v74 = vmul.f32 %v66, %v73
  %v75 = vsub.f32 %v21, %v74
  %77 = vset.pattern.permute.xlu0 0
  %78 = vperm.xlu0 %77, %v73
  %v79 = vpop.permute.xlu0 %78
  %v81 = vunpack.c.l.s4 839922192
  %v82 = vunpack.c.0.s8 %v81
  %v83 = vlaneseq
  %v84 = vshrl.u32 %v83, 7
  %v85 = vsub.s32 %v82, %v84
  %v86 = vrot.slane %v79, %v85
  %v88 = vmul.f32 %v24, %v86
  %90 = vset.pattern.permute.xlu0 0
  %91 = vperm.xlu0 %90, %v75
  %v92 = vpop.permute.xlu0 %91
  %v94 = vunpack.c.l.s4 839922192
  %v95 = vunpack.c.0.s8 %v94
  %v96 = vlaneseq
  %v97 = vshrl.u32 %v96, 7
  %v98 = vsub.s32 %v95, %v97
  %v99 = vrot.slane %v92, %v98
  %v101 = vadd.f32 %v88, %v99
  %v102 = vmax.f32 %v101, 0.0
  %104 = vset.pattern.permute.xlu0 0
  %105 = vperm.xlu0 %104, %v23
  %v106 = vpop.permute.xlu0 %105
  %109 = vset.pattern.permute.xlu0 0
  %110 = vperm.xlu0 %109, %v22
  %v111 = vpop.permute.xlu0 %110
  %v114 = vlaneseq
  %v115 = vshrl.u32 %v114, 7
  %v116 = vsub.s32 0, %v115
  %v117 = vrot.slane %v102, %v116
  %v118 = vlaneseq
  %v119 = vshrl.u32 %v118, 7
  %v120 = vsub.s32 4, %v119
  %v121 = vrot.slane %v102, %v120
  %v124 = vlaneseq
  %v125 = vshrl.u32 %v124, 7
  %v126 = vsub.s32 0, %v125
  %v127 = vrot.slane %v117, %v126
  %v128 = vlaneseq
  %v129 = vshrl.u32 %v128, 7
  %v130 = vsub.s32 0, %v129
  %v131 = vrot.slane %v121, %v130
  %v132 = vmul.f32 %v111, %v127
  %v133 = vmul.f32 %v111, %v131
  %v134 = vadd.f32 %v106, %v132
  %v135 = vadd.f32 %v106, %v133
  %136 = vset.pattern.permute.xlu0 1
  %137 = vperm.xlu0 %136, %v22
  %v138 = vpop.permute.xlu0 %137
  %v140 = vlaneseq
  %v141 = vshrl.u32 %v140, 7
  %v142 = vsub.s32 1, %v141
  %v143 = vrot.slane %v102, %v142
  %v144 = vlaneseq
  %v145 = vshrl.u32 %v144, 7
  %v146 = vsub.s32 5, %v145
  %v147 = vrot.slane %v102, %v146
  %v150 = vlaneseq
  %v151 = vshrl.u32 %v150, 7
  %v152 = vsub.s32 1, %v151
  %v153 = vrot.slane %v143, %v152
  %v154 = vlaneseq
  %v155 = vshrl.u32 %v154, 7
  %v156 = vsub.s32 1, %v155
  %v157 = vrot.slane %v147, %v156
  %v158 = vmul.f32 %v138, %v153
  %v159 = vmul.f32 %v138, %v157
  %v160 = vadd.f32 %v134, %v158
  %v161 = vadd.f32 %v135, %v159
  %162 = vset.pattern.permute.xlu0 2
  %163 = vperm.xlu0 %162, %v22
  %v164 = vpop.permute.xlu0 %163
  %v166 = vlaneseq
  %v167 = vshrl.u32 %v166, 7
  %v168 = vsub.s32 2, %v167
  %v169 = vrot.slane %v102, %v168
  %v170 = vlaneseq
  %v171 = vshrl.u32 %v170, 7
  %v172 = vsub.s32 6, %v171
  %v173 = vrot.slane %v102, %v172
  %v176 = vlaneseq
  %v177 = vshrl.u32 %v176, 7
  %v178 = vsub.s32 2, %v177
  %v179 = vrot.slane %v169, %v178
  %v180 = vlaneseq
  %v181 = vshrl.u32 %v180, 7
  %v182 = vsub.s32 2, %v181
  %v183 = vrot.slane %v173, %v182
  %v184 = vmul.f32 %v164, %v179
  %v185 = vmul.f32 %v164, %v183
  %v186 = vadd.f32 %v160, %v184
  %v187 = vadd.f32 %v161, %v185
  %188 = vset.pattern.permute.xlu0 3
  %189 = vperm.xlu0 %188, %v22
  %v190 = vpop.permute.xlu0 %189
  %v192 = vlaneseq
  %v193 = vshrl.u32 %v192, 7
  %v194 = vsub.s32 3, %v193
  %v195 = vrot.slane %v102, %v194
  %v196 = vlaneseq
  %v197 = vshrl.u32 %v196, 7
  %v198 = vsub.s32 7, %v197
  %v199 = vrot.slane %v102, %v198
  %v202 = vlaneseq
  %v203 = vshrl.u32 %v202, 7
  %v204 = vsub.s32 3, %v203
  %v205 = vrot.slane %v195, %v204
  %v206 = vlaneseq
  %v207 = vshrl.u32 %v206, 7
  %v208 = vsub.s32 3, %v207
  %v209 = vrot.slane %v199, %v208
  %v210 = vmul.f32 %v190, %v205
  %v211 = vmul.f32 %v190, %v209
  %v212 = vadd.f32 %v186, %v210
  %v213 = vadd.f32 %v187, %v211
  %v214 = vmul.f32 %v26, %v86
  %v215 = vadd.f32 %v214, %v99
  %v216 = vmax.f32 %v215, 0.0
  %v218 = vlaneseq
  %v219 = vshrl.u32 %v218, 7
  %v220 = vsub.s32 0, %v219
  %v221 = vrot.slane %v216, %v220
  %v222 = vlaneseq
  %v223 = vshrl.u32 %v222, 7
  %v224 = vsub.s32 4, %v223
  %v225 = vrot.slane %v216, %v224
  %v228 = vlaneseq
  %v229 = vshrl.u32 %v228, 7
  %v230 = vsub.s32 0, %v229
  %v231 = vrot.slane %v221, %v230
  %v232 = vlaneseq
  %v233 = vshrl.u32 %v232, 7
  %v234 = vsub.s32 0, %v233
  %v235 = vrot.slane %v225, %v234
  %v236 = vmul.f32 %v111, %v231
  %v237 = vmul.f32 %v111, %v235
  %v238 = vadd.f32 %v106, %v236
  %v239 = vadd.f32 %v106, %v237
  %v240 = vlaneseq
  %v241 = vshrl.u32 %v240, 7
  %v242 = vsub.s32 1, %v241
  %v243 = vrot.slane %v216, %v242
  %v244 = vlaneseq
  %v245 = vshrl.u32 %v244, 7
  %v246 = vsub.s32 5, %v245
  %v247 = vrot.slane %v216, %v246
  %v250 = vlaneseq
  %v251 = vshrl.u32 %v250, 7
  %v252 = vsub.s32 1, %v251
  %v253 = vrot.slane %v243, %v252
  %v254 = vlaneseq
  %v255 = vshrl.u32 %v254, 7
  %v256 = vsub.s32 1, %v255
  %v257 = vrot.slane %v247, %v256
  %v258 = vmul.f32 %v138, %v253
  %v259 = vmul.f32 %v138, %v257
  %v260 = vadd.f32 %v238, %v258
  %v261 = vadd.f32 %v239, %v259
  %v262 = vlaneseq
  %v263 = vshrl.u32 %v262, 7
  %v264 = vsub.s32 2, %v263
  %v265 = vrot.slane %v216, %v264
  %v266 = vlaneseq
  %v267 = vshrl.u32 %v266, 7
  %v268 = vsub.s32 6, %v267
  %v269 = vrot.slane %v216, %v268
  %v272 = vlaneseq
  %v273 = vshrl.u32 %v272, 7
  %v274 = vsub.s32 2, %v273
  %v275 = vrot.slane %v265, %v274
  %v276 = vlaneseq
  %v277 = vshrl.u32 %v276, 7
  %v278 = vsub.s32 2, %v277
  %v279 = vrot.slane %v269, %v278
  %v280 = vmul.f32 %v164, %v275
  %v281 = vmul.f32 %v164, %v279
  %v282 = vadd.f32 %v260, %v280
  %v283 = vadd.f32 %v261, %v281
  %v284 = vlaneseq
  %v285 = vshrl.u32 %v284, 7
  %v286 = vsub.s32 3, %v285
  %v287 = vrot.slane %v216, %v286
  %v288 = vlaneseq
  %v289 = vshrl.u32 %v288, 7
  %v290 = vsub.s32 7, %v289
  %v291 = vrot.slane %v216, %v290
  %v294 = vlaneseq
  %v295 = vshrl.u32 %v294, 7
  %v296 = vsub.s32 3, %v295
  %v297 = vrot.slane %v287, %v296
  %v298 = vlaneseq
  %v299 = vshrl.u32 %v298, 7
  %v300 = vsub.s32 3, %v299
  %v301 = vrot.slane %v291, %v300
  %v302 = vmul.f32 %v190, %v297
  %v303 = vmul.f32 %v190, %v301
  %v304 = vadd.f32 %v282, %v302
  %v305 = vadd.f32 %v283, %v303
  %v306 = vsel %vm30, %v212, 0.0
  %v307 = vsel %vm30, %v213, 0.0
  %v308 = vadd.f32 %v306, %v307
  %309 = vadd.xlane.f32.xlu0 %v308
  %v310 = vpop.xlane.xlu0 %309
  %v311 = vadd.f32 %v310, 0.0
  %v312 = vmul.f32 %v212, %v212
  %v313 = vmul.f32 %v213, %v213
  %v314 = vsel %vm30, %v312, 0.0
  %v315 = vsel %vm30, %v313, 0.0
  %v316 = vadd.f32 %v314, %v315
  %317 = vadd.xlane.f32.xlu0 %v316
  %v318 = vpop.xlane.xlu0 %317
  %v319 = vadd.f32 %v318, 0.0
  %v320 = vsel %vm30, %v304, 0.0
  %v321 = vsel %vm30, %v305, 0.0
  %v322 = vadd.f32 %v320, %v321
  %323 = vadd.xlane.f32.xlu0 %v322
  %v324 = vpop.xlane.xlu0 %323
  %v325 = vadd.f32 %v311, %v324
  %v326 = vmul.f32 %v304, %v304
  %v327 = vmul.f32 %v305, %v305
  %v328 = vsel %vm30, %v326, 0.0
  %v329 = vsel %vm30, %v327, 0.0
  %v330 = vadd.f32 %v328, %v329
  %331 = vadd.xlane.f32.xlu0 %v330
  %v332 = vpop.xlane.xlu0 %331
  %v333 = vadd.f32 %v319, %v332
  %v334 = vmul.f32 %v325, 0.001953125
  %v335 = vmul.f32 %v333, 0.001953125
  %v336 = vmul.f32 %v334, %v334
  %v337 = vsub.f32 %v335, %v336
  %v338 = vmax.f32 %v337, 0.0
  %v339 = vadd.f32 %v338, 1e-05
  %v340 = vrsqrt.pop %v339
  %v341 = vmul.f32 %v20, %v340
  %v342 = vmul.f32 %v334, %v341
  %v343 = vsub.f32 %v21, %v342
  %345 = vset.pattern.permute.xlu0 0
  %346 = vperm.xlu0 %345, %v341
  %v347 = vpop.permute.xlu0 %346
  %v349 = vmul.f32 %v212, %v347
  %v350 = vmul.f32 %v213, %v347
  %352 = vset.pattern.permute.xlu0 0
  %353 = vperm.xlu0 %352, %v343
  %v354 = vpop.permute.xlu0 %353
  %v356 = vadd.f32 %v349, %v354
  %v357 = vadd.f32 %v350, %v354
  %v358 = vmax.f32 %v356, 0.0
  %v359 = vmax.f32 %v357, 0.0
  %v360 = vlaneseq
  %v361 = vshrl.u32 %v360, 7
  %v362 = vsub.s32 0, %v361
  %v363 = vrot.slane %v358, %v362
  %v364 = vlaneseq
  %v365 = vshrl.u32 %v364, 7
  %v366 = vsub.s32 0, %v365
  %v367 = vrot.slane %v359, %v366
  %v368 = vmul.f32 %v111, %v363
  %v369 = vmul.f32 %v111, %v367
  %v370 = vadd.f32 %v106, %v368
  %v371 = vadd.f32 %v106, %v369
  %v372 = vlaneseq
  %v373 = vshrl.u32 %v372, 7
  %v374 = vsub.s32 1, %v373
  %v375 = vrot.slane %v358, %v374
  %v376 = vlaneseq
  %v377 = vshrl.u32 %v376, 7
  %v378 = vsub.s32 1, %v377
  %v379 = vrot.slane %v359, %v378
  %v380 = vmul.f32 %v138, %v375
  %v381 = vmul.f32 %v138, %v379
  %v382 = vadd.f32 %v370, %v380
  %v383 = vadd.f32 %v371, %v381
  %v384 = vlaneseq
  %v385 = vshrl.u32 %v384, 7
  %v386 = vsub.s32 2, %v385
  %v387 = vrot.slane %v358, %v386
  %v388 = vlaneseq
  %v389 = vshrl.u32 %v388, 7
  %v390 = vsub.s32 2, %v389
  %v391 = vrot.slane %v359, %v390
  %v392 = vmul.f32 %v164, %v387
  %v393 = vmul.f32 %v164, %v391
  %v394 = vadd.f32 %v382, %v392
  %v395 = vadd.f32 %v383, %v393
  %v396 = vlaneseq
  %v397 = vshrl.u32 %v396, 7
  %v398 = vsub.s32 3, %v397
  %v399 = vrot.slane %v358, %v398
  %v400 = vlaneseq
  %v401 = vshrl.u32 %v400, 7
  %v402 = vsub.s32 3, %v401
  %v403 = vrot.slane %v359, %v402
  %v404 = vmul.f32 %v190, %v399
  %v405 = vmul.f32 %v190, %v403
  %v406 = vadd.f32 %v394, %v404
  %v407 = vadd.f32 %v395, %v405
  %v408 = vmul.f32 %v304, %v347
  %v409 = vmul.f32 %v305, %v347
  %v410 = vadd.f32 %v408, %v354
  %v411 = vadd.f32 %v409, %v354
  %v412 = vmax.f32 %v410, 0.0
  %v413 = vmax.f32 %v411, 0.0
  %v414 = vlaneseq
  %v415 = vshrl.u32 %v414, 7
  %v416 = vsub.s32 0, %v415
  %v417 = vrot.slane %v412, %v416
  %v418 = vlaneseq
  %v419 = vshrl.u32 %v418, 7
  %v420 = vsub.s32 0, %v419
  %v421 = vrot.slane %v413, %v420
  %v422 = vmul.f32 %v111, %v417
  %v423 = vmul.f32 %v111, %v421
  %v424 = vadd.f32 %v106, %v422
  %v425 = vadd.f32 %v106, %v423
  %v426 = vlaneseq
  %v427 = vshrl.u32 %v426, 7
  %v428 = vsub.s32 1, %v427
  %v429 = vrot.slane %v412, %v428
  %v430 = vlaneseq
  %v431 = vshrl.u32 %v430, 7
  %v432 = vsub.s32 1, %v431
  %v433 = vrot.slane %v413, %v432
  %v434 = vmul.f32 %v138, %v429
  %v435 = vmul.f32 %v138, %v433
  %v436 = vadd.f32 %v424, %v434
  %v437 = vadd.f32 %v425, %v435
  %v438 = vlaneseq
  %v439 = vshrl.u32 %v438, 7
  %v440 = vsub.s32 2, %v439
  %v441 = vrot.slane %v412, %v440
  %v442 = vlaneseq
  %v443 = vshrl.u32 %v442, 7
  %v444 = vsub.s32 2, %v443
  %v445 = vrot.slane %v413, %v444
  %v446 = vmul.f32 %v164, %v441
  %v447 = vmul.f32 %v164, %v445
  %v448 = vadd.f32 %v436, %v446
  %v449 = vadd.f32 %v437, %v447
  %v450 = vlaneseq
  %v451 = vshrl.u32 %v450, 7
  %v452 = vsub.s32 3, %v451
  %v453 = vrot.slane %v412, %v452
  %v454 = vlaneseq
  %v455 = vshrl.u32 %v454, 7
  %v456 = vsub.s32 3, %v455
  %v457 = vrot.slane %v413, %v456
  %v458 = vmul.f32 %v190, %v453
  %v459 = vmul.f32 %v190, %v457
  %v460 = vadd.f32 %v448, %v458
  %v461 = vadd.f32 %v449, %v459
  %v462 = vsel %vm30, %v406, 0.0
  %v463 = vsel %vm30, %v407, 0.0
  %v464 = vadd.f32 %v462, %v463
  %465 = vadd.xlane.f32.xlu0 %v464
  %v466 = vpop.xlane.xlu0 %465
  %v467 = vadd.f32 %v466, 0.0
  %v468 = vmul.f32 %v406, %v406
  %v469 = vmul.f32 %v407, %v407
  %v470 = vsel %vm30, %v468, 0.0
  %v471 = vsel %vm30, %v469, 0.0
  %v472 = vadd.f32 %v470, %v471
  %473 = vadd.xlane.f32.xlu0 %v472
  %v474 = vpop.xlane.xlu0 %473
  %v475 = vadd.f32 %v474, 0.0
  %v476 = vsel %vm30, %v460, 0.0
  %v477 = vsel %vm30, %v461, 0.0
  %v478 = vadd.f32 %v476, %v477
  %479 = vadd.xlane.f32.xlu0 %v478
  %v480 = vpop.xlane.xlu0 %479
  %v481 = vadd.f32 %v467, %v480
  %v482 = vmul.f32 %v460, %v460
  %v483 = vmul.f32 %v461, %v461
  %v484 = vsel %vm30, %v482, 0.0
  %v485 = vsel %vm30, %v483, 0.0
  %v486 = vadd.f32 %v484, %v485
  %487 = vadd.xlane.f32.xlu0 %v486
  %v488 = vpop.xlane.xlu0 %487
  %v489 = vadd.f32 %v475, %v488
  %v490 = vmul.f32 %v481, 0.001953125
  %v491 = vmul.f32 %v489, 0.001953125
  %v492 = vmul.f32 %v490, %v490
  %v493 = vsub.f32 %v491, %v492
  %v494 = vmax.f32 %v493, 0.0
  %v495 = vadd.f32 %v494, 1e-05
  %v496 = vrsqrt.pop %v495
  %v497 = vmul.f32 %v20, %v496
  %v498 = vmul.f32 %v490, %v497
  %v499 = vsub.f32 %v21, %v498
  %501 = vset.pattern.permute.xlu0 0
  %502 = vperm.xlu0 %501, %v497
  %v503 = vpop.permute.xlu0 %502
  %v505 = vmul.f32 %v406, %v503
  %v506 = vmul.f32 %v407, %v503
  %508 = vset.pattern.permute.xlu0 0
  %509 = vperm.xlu0 %508, %v499
  %v510 = vpop.permute.xlu0 %509
  %v512 = vadd.f32 %v505, %v510
  %v513 = vadd.f32 %v506, %v510
  %v514 = vmax.f32 %v512, 0.0
  %v515 = vmax.f32 %v513, 0.0
  %v516 = vlaneseq
  %v517 = vshrl.u32 %v516, 7
  %v518 = vsub.s32 0, %v517
  %v519 = vrot.slane %v514, %v518
  %v520 = vlaneseq
  %v521 = vshrl.u32 %v520, 7
  %v522 = vsub.s32 0, %v521
  %v523 = vrot.slane %v515, %v522
  %v524 = vmul.f32 %v111, %v519
  %v525 = vmul.f32 %v111, %v523
  %v526 = vadd.f32 %v106, %v524
  %v527 = vadd.f32 %v106, %v525
  %v528 = vlaneseq
  %v529 = vshrl.u32 %v528, 7
  %v530 = vsub.s32 1, %v529
  %v531 = vrot.slane %v514, %v530
  %v532 = vlaneseq
  %v533 = vshrl.u32 %v532, 7
  %v534 = vsub.s32 1, %v533
  %v535 = vrot.slane %v515, %v534
  %v536 = vmul.f32 %v138, %v531
  %v537 = vmul.f32 %v138, %v535
  %v538 = vadd.f32 %v526, %v536
  %v539 = vadd.f32 %v527, %v537
  %v540 = vlaneseq
  %v541 = vshrl.u32 %v540, 7
  %v542 = vsub.s32 2, %v541
  %v543 = vrot.slane %v514, %v542
  %v544 = vlaneseq
  %v545 = vshrl.u32 %v544, 7
  %v546 = vsub.s32 2, %v545
  %v547 = vrot.slane %v515, %v546
  %v548 = vmul.f32 %v164, %v543
  %v549 = vmul.f32 %v164, %v547
  %v550 = vadd.f32 %v538, %v548
  %v551 = vadd.f32 %v539, %v549
  %v552 = vlaneseq
  %v553 = vshrl.u32 %v552, 7
  %v554 = vsub.s32 3, %v553
  %v555 = vrot.slane %v514, %v554
  %v556 = vlaneseq
  %v557 = vshrl.u32 %v556, 7
  %v558 = vsub.s32 3, %v557
  %v559 = vrot.slane %v515, %v558
  %v560 = vmul.f32 %v190, %v555
  %v561 = vmul.f32 %v190, %v559
  %v562 = vadd.f32 %v550, %v560
  %v563 = vadd.f32 %v551, %v561
  %v564 = vmul.f32 %v460, %v503
  %v565 = vmul.f32 %v461, %v503
  %v566 = vadd.f32 %v564, %v510
  %v567 = vadd.f32 %v565, %v510
  %v568 = vmax.f32 %v566, 0.0
  %v569 = vmax.f32 %v567, 0.0
  %v570 = vlaneseq
  %v571 = vshrl.u32 %v570, 7
  %v572 = vsub.s32 0, %v571
  %v573 = vrot.slane %v568, %v572
  %v574 = vlaneseq
  %v575 = vshrl.u32 %v574, 7
  %v576 = vsub.s32 0, %v575
  %v577 = vrot.slane %v569, %v576
  %v578 = vmul.f32 %v111, %v573
  %v579 = vmul.f32 %v111, %v577
  %v580 = vadd.f32 %v106, %v578
  %v581 = vadd.f32 %v106, %v579
  %v582 = vlaneseq
  %v583 = vshrl.u32 %v582, 7
  %v584 = vsub.s32 1, %v583
  %v585 = vrot.slane %v568, %v584
  %v586 = vlaneseq
  %v587 = vshrl.u32 %v586, 7
  %v588 = vsub.s32 1, %v587
  %v589 = vrot.slane %v569, %v588
  %v590 = vmul.f32 %v138, %v585
  %v591 = vmul.f32 %v138, %v589
  %v592 = vadd.f32 %v580, %v590
  %v593 = vadd.f32 %v581, %v591
  %v594 = vlaneseq
  %v595 = vshrl.u32 %v594, 7
  %v596 = vsub.s32 2, %v595
  %v597 = vrot.slane %v568, %v596
  %v598 = vlaneseq
  %v599 = vshrl.u32 %v598, 7
  %v600 = vsub.s32 2, %v599
  %v601 = vrot.slane %v569, %v600
  %v602 = vmul.f32 %v164, %v597
  %v603 = vmul.f32 %v164, %v601
  %v604 = vadd.f32 %v592, %v602
  %v605 = vadd.f32 %v593, %v603
  %v606 = vlaneseq
  %v607 = vshrl.u32 %v606, 7
  %v608 = vsub.s32 3, %v607
  %v609 = vrot.slane %v568, %v608
  %v610 = vlaneseq
  %v611 = vshrl.u32 %v610, 7
  %v612 = vsub.s32 3, %v611
  %v613 = vrot.slane %v569, %v612
  %v614 = vmul.f32 %v190, %v609
  %v615 = vmul.f32 %v190, %v613
  %v616 = vadd.f32 %v604, %v614
  %v617 = vadd.f32 %v605, %v615
  %v618 = vadd.f32 %v562, %v24
  %v619 = vadd.f32 %v563, %v28
  %v622 = vcombine.low %v618, %v619
  %624 = vst [vmem:[%s5] sm:$0xff] %v622
  %v625 = vadd.f32 %v616, %v26
  %v626 = vadd.f32 %v617, %v48
  %v629 = vcombine.low %v625, %v626
  %s631 = scalar_lea.vmem %s5, 8
  %632 = vst [vmem:[%s631] sm:$0xff] %v629
  // Predicated region
  $region22: #{_forward_fused.2} parent=0 // pred_check
    _
  $region23: #{_forward_fused.2} parent=0 // pred_check_branch
    %634 = sbr.rel (0) target = $region25
  $region24: #{_forward_fused.2} parent=0 // pred_region
    _
  $region25: #{_forward_fused.2} parent=0 // pred_fallthru
    _
  // Predicated region
  $region26: #{_forward_fused.2} parent=0 // pred_check
    _
  $region27: #{_forward_fused.2} parent=0 // pred_check_branch
    %636 = sbr.rel (0) target = $region29
  $region28: #{_forward_fused.2} parent=0 // pred_region
    _
  $region29: #{_forward_fused.2} parent=0 // pred_fallthru
    _

// kernel: _forward_fused.3
$region0: #{_forward_fused.3}
  #allocation0 [shape = 'u32[]', space=smem, size = 0x4, offset = 0x4, fixed_abs, tag = 'smem constant byte address 0x4 - core index']
  #allocation1 [shape = 'u32[144,128]{1,0:T(1,128)}', space=vmem, size = 0x12000, scoped, tag = 'internal scratch']
  %s0 = inlined_call_operand.vmem [shape: f32[8,16,16], index: 0, kind: input, shape index: {}]
  %s1 = inlined_call_operand.vmem [shape: f32[32,16], index: 1, kind: input, shape index: {}]
  %s2 = inlined_call_operand.vmem [shape: f32[16,32], index: 2, kind: input, shape index: {}]
  %s3 = inlined_call_operand.hbm [shape: f32[8,32,32], index: 3, kind: output, shape index: {}]
  %s4 = sld [smem:[#allocation0]]
  $region22: #{_forward_fused.3} parent=0
    _
  %s6 = ssub.s32 1, %s4
  %s7 = scalar_select 0, %s6, %s4
  $region1: #{_forward_fused.3} parent=0
    #allocation2 [shape = 'u8[131072]{0}', space=vmem, size = 0x20000, scoped, tag = 'output window, operand 0, single buffered']
    #allocation3 [shape = 's32[1]{0}', space=sflag, size = 0x4, scoped, tag = 'scoped memory for _forward_fused.3']
    %8 = vsyncpa [#allocation3], 0
    // Predicated region
    $region2: #{_forward_fused.3} parent=1 // pred_check
      _
    $region3: #{_forward_fused.3} parent=1 // pred_check_branch
      %10 = sbr.rel (0) target = $region5
    $region4: #{_forward_fused.3} parent=1 // pred_region
      _
    $region5: #{_forward_fused.3} parent=1 // pred_fallthru
      _
    // Predicated region
    $region6: #{_forward_fused.3} parent=1 // pred_check
      _
    $region7: #{_forward_fused.3} parent=1 // pred_check_branch
      %12 = sbr.rel (0) target = $region9
    $region8: #{_forward_fused.3} parent=1 // pred_region
      _
    $region9: #{_forward_fused.3} parent=1 // pred_fallthru
      _
    // Predicated region
    $region10: #{_forward_fused.3} parent=1 // pred_check
      _
    $region11: #{_forward_fused.3} parent=1 // pred_check_branch
      %14 = sbr.rel (0) target = $region13
    $region12: #{_forward_fused.3} parent=1 // pred_region
      _
    $region13: #{_forward_fused.3} parent=1 // pred_fallthru
      _
    %v15 = vld [vmem:[%s0] sm:$0xff]
    %v16 = vld [vmem:[%s0 + $0x8] sm:$0xff]
    %v17 = vld [vmem:[%s0 + $0x10] sm:$0xff]
    %v18 = vld [vmem:[%s0 + $0x18] sm:$0xff]
    %v19 = vld [vmem:[%s0 + $0x20] sm:$0xff]
    %v20 = vld [vmem:[%s0 + $0x28] sm:$0xff]
    %v21 = vld [vmem:[%s0 + $0x30] sm:$0xff]
    %v22 = vld [vmem:[%s0 + $0x38] sm:$0xff]
    %v23 = vld [vmem:[%s0 + $0x40] sm:$0xff]
    %v24 = vld [vmem:[%s0 + $0x48] sm:$0xff]
    %v25 = vld [vmem:[%s0 + $0x50] sm:$0xff]
    %v26 = vld [vmem:[%s0 + $0x58] sm:$0xff]
    %v27 = vld [vmem:[%s0 + $0x60] sm:$0xff]
    %v28 = vld [vmem:[%s0 + $0x68] sm:$0xff]
    %v29 = vld [vmem:[%s0 + $0x70] sm:$0xff]
    %v30 = vld [vmem:[%s0 + $0x78] sm:$0xff]
    %v31 = vld [vmem:[%s1] sm:$0xff]
    %v32 = vld [vmem:[%s1 + $0x8] sm:$0xff]
    %v33 = vld [vmem:[%s1 + $0x10] sm:$0xff]
    %v34 = vld [vmem:[%s1 + $0x18] sm:$0xff]
    %v35 = vld [vmem:[%s2] sm:$0xff]
    %v36 = vld [vmem:[%s2 + $0x8] sm:$0xff]
    %vm37 = vcmask 130048
    %v39 = vsel %vm37, %v31, 0
    %v42 = vsel %vm37, %v32, 0
    %v45 = vsel %vm37, %v33, 0
    %v48 = vsel %vm37, %v34, 0
    %50 = vmatprep.subr.mxu0 0.0
    %51 = vmatpush1.msra.mxu0 %v15
    %52 = vmatprep.subr.mxu0 0.0
    %53 = vmatpush1.msra.mxu0 %v16
    %54 = vmatprep.subr.mxu0 0.0
    %55 = vmatpush1.msra.mxu0 0.0
    %56 = vmatprep.subr.mxu0 0.0
    %57 = vmatpush1.msra.mxu0 0.0
    %58 = vmatprep.subr.mxu0 0.0
    %59 = vmatpush1.msra.mxu0 0.0
    %60 = vmatprep.subr.mxu0 0.0
    %61 = vmatpush1.msra.mxu0 0.0
    %62 = vmatprep.subr.mxu0 0.0
    %63 = vmatpush1.msra.mxu0 0.0
    %64 = vmatprep.subr.mxu0 0.0
    %65 = vmatpush1.msra.mxu0 0.0
    %66 = vmatprep.subr.mxu0 0.0
    %67 = vmatpush1.msra.mxu0 0.0
    %68 = vmatprep.subr.mxu0 0.0
    %69 = vmatpush1.msra.mxu0 0.0
    %70 = vmatprep.subr.mxu0 0.0
    %71 = vmatpush1.msra.mxu0 0.0
    %72 = vmatprep.subr.mxu0 0.0
    %73 = vmatpush1.msra.mxu0 0.0
    %74 = vmatprep.subr.mxu0 0.0
    %75 = vmatpush1.msra.mxu0 0.0
    %76 = vmatprep.subr.mxu0 0.0
    %77 = vmatpush1.msra.mxu0 0.0
    %78 = vmatprep.subr.mxu0 0.0
    %79 = vmatpush1.msra.mxu0 0.0
    %80 = vmatprep.subr.mxu0 0.0
    %81 = vmatpush1.msra.mxu0 0.0
    %82 = vmatprep.subr.mxu0 0.0
    %83 = vmatpush1.msra.mxu0 0.0
    %84 = vmatprep.subr.mxu0 0.0
    %85 = vmatpush1.msra.mxu0 0.0
    %86 = vmatprep.subr.mxu0 0.0
    %87 = vmatpush1.msra.mxu0 0.0
    %88 = vmatprep.subr.mxu0 0.0
    %89 = vmatpush1.msra.mxu0 0.0
    %90 = vmatprep.subr.mxu0 0.0
    %91 = vmatpush1.msra.mxu0 0.0
    %92 = vmatprep.subr.mxu0 0.0
    %93 = vmatpush1.msra.mxu0 0.0
    %94 = vmatprep.subr.mxu0 0.0
    %95 = vmatpush1.msra.mxu0 0.0
    %96 = vmatprep.subr.mxu0 0.0
    %97 = vmatpush1.msra.mxu0 0.0
    %98 = vmatprep.subr.mxu0 0.0
    %99 = vmatpush1.msra.mxu0 0.0
    %100 = vmatprep.subr.mxu0 0.0
    %101 = vmatpush1.msra.mxu0 0.0
    %102 = vmatprep.subr.mxu0 0.0
    %103 = vmatpush1.msra.mxu0 0.0
    %104 = vmatprep.subr.mxu0 0.0
    %105 = vmatpush1.msra.mxu0 0.0
    %106 = vmatprep.subr.mxu0 0.0
    %107 = vmatpush1.msra.mxu0 0.0
    %108 = vmatprep.subr.mxu0 0.0
    %109 = vmatpush1.msra.mxu0 0.0
    %110 = vmatprep.subr.mxu0 0.0
    %111 = vmatpush1.msra.mxu0 0.0
    %112 = vmatprep.subr.mxu0 0.0
    %113 = vmatpush1.msra.mxu0 0.0
    %114 = vmatprep.mubr.f32.mxu0 0.0
    %115 = vmatmul.mubr.f32.gmra.mrb[0].mxu0 %v39
    %v116 = vpop.f32.mrb[0].mxu0
    %v117 = vadd.f32 0.0, %v116
    %v118 = vpop.f32.mrb[0].mxu0
    %119 = vmatprep.mubr.f32.mxu0 0.0
    %120 = vmatmul.mubr.f32.gmra.mrb[0].mxu0 %v42
    %v121 = vpop.f32.mrb[0].mxu0
    %v122 = vadd.f32 0.0, %v121
    %v123 = vpop.f32.mrb[0].mxu0
    %124 = vmatprep.mubr.f32.mxu0 0.0
    %125 = vmatmul.mubr.f32.gmra.mrb[0].mxu0 %v45
    %v126 = vpop.f32.mrb[0].mxu0
    %v127 = vadd.f32 0.0, %v126
    %v128 = vpop.f32.mrb[0].mxu0
    %129 = vmatprep.mubr.f32.mxu0 0.0
    %130 = vmatmul.mubr.f32.gmra.mrb[0].mxu0 %v48
    %v131 = vpop.f32.mrb[0].mxu0
    %v132 = vadd.f32 0.0, %v131
    %v133 = vpop.f32.mrb[0].mxu0
    %134 = vdwg.mxu0
    %135 = vmatprep.subr.mxu0 0.0
    %136 = vmatpush1.msra.mxu0 %v17
    %137 = vmatprep.subr.mxu0 0.0
    %138 = vmatpush1.msra.mxu0 %v18
    %139 = vmatprep.subr.mxu0 0.0
    %140 = vmatpush1.msra.mxu0 0.0
    %141 = vmatprep.subr.mxu0 0.0
    %142 = vmatpush1.msra.mxu0 0.0
    %143 = vmatprep.subr.mxu0 0.0
    %144 = vmatpush1.msra.mxu0 0.0
    %145 = vmatprep.subr.mxu0 0.0
    %146 = vmatpush1.msra.mxu0 0.0
    %147 = vmatprep.subr.mxu0 0.0
    %148 = vmatpush1.msra.mxu0 0.0
    %149 = vmatprep.subr.mxu0 0.0
    %150 = vmatpush1.msra.mxu0 0.0
    %151 = vmatprep.subr.mxu0 0.0
    %152 = vmatpush1.msra.mxu0 0.0
    %153 = vmatprep.subr.mxu0 0.0
    %154 = vmatpush1.msra.mxu0 0.0
    %155 = vmatprep.subr.mxu0 0.0
    %156 = vmatpush1.msra.mxu0 0.0
    %157 = vmatprep.subr.mxu0 0.0
    %158 = vmatpush1.msra.mxu0 0.0
    %159 = vmatprep.subr.mxu0 0.0
    %160 = vmatpush1.msra.mxu0 0.0
    %161 = vmatprep.subr.mxu0 0.0
    %162 = vmatpush1.msra.mxu0 0.0
    %163 = vmatprep.subr.mxu0 0.0
    %164 = vmatpush1.msra.mxu0 0.0
    %165 = vmatprep.subr.mxu0 0.0
    %166 = vmatpush1.msra.mxu0 0.0
    %167 = vmatprep.subr.mxu0 0.0
    %168 = vmatpush1.msra.mxu0 0.0
    %169 = vmatprep.subr.mxu0 0.0
    %170 = vmatpush1.msra.mxu0 0.0
    %171 = vmatprep.subr.mxu0 0.0
    %172 = vmatpush1.msra.mxu0 0.0
    %173 = vmatprep.subr.mxu0 0.0
    %174 = vmatpush1.msra.mxu0 0.0
    %175 = vmatprep.subr.mxu0 0.0
    %176 = vmatpush1.msra.mxu0 0.0
    %177 = vmatprep.subr.mxu0 0.0
    %178 = vmatpush1.msra.mxu0 0.0
    %179 = vmatprep.subr.mxu0 0.0
    %180 = vmatpush1.msra.mxu0 0.0
    %181 = vmatprep.subr.mxu0 0.0
    %182 = vmatpush1.msra.mxu0 0.0
    %183 = vmatprep.subr.mxu0 0.0
    %184 = vmatpush1.msra.mxu0 0.0
    %185 = vmatprep.subr.mxu0 0.0
    %186 = vmatpush1.msra.mxu0 0.0
    %187 = vmatprep.subr.mxu0 0.0
    %188 = vmatpush1.msra.mxu0 0.0
    %189 = vmatprep.subr.mxu0 0.0
    %190 = vmatpush1.msra.mxu0 0.0
    %191 = vmatprep.subr.mxu0 0.0
    %192 = vmatpush1.msra.mxu0 0.0
    %193 = vmatprep.subr.mxu0 0.0
    %194 = vmatpush1.msra.mxu0 0.0
    %195 = vmatprep.subr.mxu0 0.0
    %196 = vmatpush1.msra.mxu0 0.0
    %197 = vmatprep.subr.mxu0 0.0
    %198 = vmatpush1.msra.mxu0 0.0
    %199 = vmatprep.mubr.f32.mxu0 0.0
    %200 = vmatmul.mubr.f32.gmra.mrb[0].mxu0 %v39
    %v201 = vpop.f32.mrb[0].mxu0
    %v202 = vadd.f32 0.0, %v201
    %v203 = vpop.f32.mrb[0].mxu0
    %204 = vmatprep.mubr.f32.mxu0 0.0
    %205 = vmatmul.mubr.f32.gmra.mrb[0].mxu0 %v42
    %v206 = vpop.f32.mrb[0].mxu0
    %v207 = vadd.f32 0.0, %v206
    %v208 = vpop.f32.mrb[0].mxu0
    %209 = vmatprep.mubr.f32.mxu0 0.0
    %210 = vmatmul.mubr.f32.gmra.mrb[0].mxu0 %v45
    %v211 = vpop.f32.mrb[0].mxu0
    %v212 = vadd.f32 0.0, %v211
    %v213 = vpop.f32.mrb[0].mxu0
    %214 = vmatprep.mubr.f32.mxu0 0.0
    %215 = vmatmul.mubr.f32.gmra.mrb[0].mxu0 %v48
    %v216 = vpop.f32.mrb[0].mxu0
    %v217 = vadd.f32 0.0, %v216
    %v218 = vpop.f32.mrb[0].mxu0
    %219 = vdwg.mxu0
    %220 = vmatprep.subr.mxu0 0.0
    %221 = vmatpush1.msra.mxu0 %v19
    %222 = vmatprep.subr.mxu0 0.0
    %223 = vmatpush1.msra.mxu0 %v20
    %224 = vmatprep.subr.mxu0 0.0
    %225 = vmatpush1.msra.mxu0 0.0
    %226 = vmatprep.subr.mxu0 0.0
    %227 = vmatpush1.msra.mxu0 0.0
    %228 = vmatprep.subr.mxu0 0.0
    %229 = vmatpush1.msra.mxu0 0.0
    %230 = vmatprep.subr.mxu0 0.0
    %231 = vmatpush1.msra.mxu0 0.0
    %232 = vmatprep.subr.mxu0 0.0
    %233 = vmatpush1.msra.mxu0 0.0
    %234 = vmatprep.subr.mxu0 0.0
    %235 = vmatpush1.msra.mxu0 0.0
    %236 = vmatprep.subr.mxu0 0.0
    %237 = vmatpush1.msra.mxu0 0.0
    %238 = vmatprep.subr.mxu0 0.0
    %239 = vmatpush1.msra.mxu0 0.0
    %240 = vmatprep.subr.mxu0 0.0
    %241 = vmatpush1.msra.mxu0 0.0
    %242 = vmatprep.subr.mxu0 0.0
    %243 = vmatpush1.msra.mxu0 0.0
    %244 = vmatprep.subr.mxu0 0.0
    %245 = vmatpush1.msra.mxu0 0.0
    %246 = vmatprep.subr.mxu0 0.0
    %247 = vmatpush1.msra.mxu0 0.0
    %248 = vmatprep.subr.mxu0 0.0
    %249 = vmatpush1.msra.mxu0 0.0
    %250 = vmatprep.subr.mxu0 0.0
    %251 = vmatpush1.msra.mxu0 0.0
    %252 = vmatprep.subr.mxu0 0.0
    %253 = vmatpush1.msra.mxu0 0.0
    %254 = vmatprep.subr.mxu0 0.0
    %255 = vmatpush1.msra.mxu0 0.0
    %256 = vmatprep.subr.mxu0 0.0
    %257 = vmatpush1.msra.mxu0 0.0
    %258 = vmatprep.subr.mxu0 0.0
    %259 = vmatpush1.msra.mxu0 0.0
    %260 = vmatprep.subr.mxu0 0.0
    %261 = vmatpush1.msra.mxu0 0.0
    %262 = vmatprep.subr.mxu0 0.0
    %263 = vmatpush1.msra.mxu0 0.0
    %264 = vmatprep.subr.mxu0 0.0
    %265 = vmatpush1.msra.mxu0 0.0
    %266 = vmatprep.subr.mxu0 0.0
    %267 = vmatpush1.msra.mxu0 0.0
    %268 = vmatprep.subr.mxu0 0.0
    %269 = vmatpush1.msra.mxu0 0.0
    %270 = vmatprep.subr.mxu0 0.0
    %271 = vmatpush1.msra.mxu0 0.0
    %272 = vmatprep.subr.mxu0 0.0
    %273 = vmatpush1.msra.mxu0 0.0
    %274 = vmatprep.subr.mxu0 0.0
    %275 = vmatpush1.msra.mxu0 0.0
    %276 = vmatprep.subr.mxu0 0.0
    %277 = vmatpush1.msra.mxu0 0.0
    %278 = vmatprep.subr.mxu0 0.0
    %279 = vmatpush1.msra.mxu0 0.0
    %280 = vmatprep.subr.mxu0 0.0
    %281 = vmatpush1.msra.mxu0 0.0
    %282 = vmatprep.subr.mxu0 0.0
    %283 = vmatpush1.msra.mxu0 0.0
    %284 = vmatprep.mubr.f32.mxu0 0.0
    %285 = vmatmul.mubr.f32.gmra.mrb[0].mxu0 %v39
    %v286 = vpop.f32.mrb[0].mxu0
    %v287 = vadd.f32 0.0, %v286
    %v288 = vpop.f32.mrb[0].mxu0
    %289 = vmatprep.mubr.f32.mxu0 0.0
    %290 = vmatmul.mubr.f32.gmra.mrb[0].mxu0 %v42
    %v291 = vpop.f32.mrb[0].mxu0
    %v292 = vadd.f32 0.0, %v291
    %v293 = vpop.f32.mrb[0].mxu0
    %294 = vmatprep.mubr.f32.mxu0 0.0
    %295 = vmatmul.mubr.f32.gmra.mrb[0].mxu0 %v45
    %v296 = vpop.f32.mrb[0].mxu0
    %v297 = vadd.f32 0.0, %v296
    %v298 = vpop.f32.mrb[0].mxu0
    %299 = vmatprep.mubr.f32.mxu0 0.0
    %300 = vmatmul.mubr.f32.gmra.mrb[0].mxu0 %v48
    %v301 = vpop.f32.mrb[0].mxu0
    %v302 = vadd.f32 0.0, %v301
    %v303 = vpop.f32.mrb[0].mxu0
    %304 = vdwg.mxu0
    %305 = vmatprep.subr.mxu0 0.0
    %306 = vmatpush1.msra.mxu0 %v21
    %307 = vmatprep.subr.mxu0 0.0
    %308 = vmatpush1.msra.mxu0 %v22
    %309 = vmatprep.subr.mxu0 0.0
    %310 = vmatpush1.msra.mxu0 0.0
    %311 = vmatprep.subr.mxu0 0.0
    %312 = vmatpush1.msra.mxu0 0.0
    %313 = vmatprep.subr.mxu0 0.0
    %314 = vmatpush1.msra.mxu0 0.0
    %315 = vmatprep.subr.mxu0 0.0
    %316 = vmatpush1.msra.mxu0 0.0
    %317 = vmatprep.subr.mxu0 0.0
    %318 = vmatpush1.msra.mxu0 0.0
    %319 = vmatprep.subr.mxu0 0.0
    %320 = vmatpush1.msra.mxu0 0.0
    %321 = vmatprep.subr.mxu0 0.0
    %322 = vmatpush1.msra.mxu0 0.0
    %323 = vmatprep.subr.mxu0 0.0
    %324 = vmatpush1.msra.mxu0 0.0
    %325 = vmatprep.subr.mxu0 0.0
    %326 = vmatpush1.msra.mxu0 0.0
    %327 = vmatprep.subr.mxu0 0.0
    %328 = vmatpush1.msra.mxu0 0.0
    %329 = vmatprep.subr.mxu0 0.0
    %330 = vmatpush1.msra.mxu0 0.0
    %331 = vmatprep.subr.mxu0 0.0
    %332 = vmatpush1.msra.mxu0 0.0
    %333 = vmatprep.subr.mxu0 0.0
    %334 = vmatpush1.msra.mxu0 0.0
    %335 = vmatprep.subr.mxu0 0.0
    %336 = vmatpush1.msra.mxu0 0.0
    %337 = vmatprep.subr.mxu0 0.0
    %338 = vmatpush1.msra.mxu0 0.0
    %339 = vmatprep.subr.mxu0 0.0
    %340 = vmatpush1.msra.mxu0 0.0
    %341 = vmatprep.subr.mxu0 0.0
    %342 = vmatpush1.msra.mxu0 0.0
    %343 = vmatprep.subr.mxu0 0.0
    %344 = vmatpush1.msra.mxu0 0.0
    %345 = vmatprep.subr.mxu0 0.0
    %346 = vmatpush1.msra.mxu0 0.0
    %347 = vmatprep.subr.mxu0 0.0
    %348 = vmatpush1.msra.mxu0 0.0
    %349 = vmatprep.subr.mxu0 0.0
    %350 = vmatpush1.msra.mxu0 0.0
    %351 = vmatprep.subr.mxu0 0.0
    %352 = vmatpush1.msra.mxu0 0.0
    %353 = vmatprep.subr.mxu0 0.0
    %354 = vmatpush1.msra.mxu0 0.0
    %355 = vmatprep.subr.mxu0 0.0
    %356 = vmatpush1.msra.mxu0 0.0
    %357 = vmatprep.subr.mxu0 0.0
    %358 = vmatpush1.msra.mxu0 0.0
    %359 = vmatprep.subr.mxu0 0.0
    %360 = vmatpush1.msra.mxu0 0.0
    %361 = vmatprep.subr.mxu0 0.0
    %362 = vmatpush1.msra.mxu0 0.0
    %363 = vmatprep.subr.mxu0 0.0
    %364 = vmatpush1.msra.mxu0 0.0
    %365 = vmatprep.subr.mxu0 0.0
    %366 = vmatpush1.msra.mxu0 0.0
    %367 = vmatprep.subr.mxu0 0.0
    %368 = vmatpush1.msra.mxu0 0.0
    %369 = vmatprep.mubr.f32.mxu0 0.0
    %370 = vmatmul.mubr.f32.gmra.mrb[0].mxu0 %v39
    %v371 = vpop.f32.mrb[0].mxu0
    %v372 = vadd.f32 0.0, %v371
    %v373 = vpop.f32.mrb[0].mxu0
    %374 = vmatprep.mubr.f32.mxu0 0.0
    %375 = vmatmul.mubr.f32.gmra.mrb[0].mxu0 %v42
    %v376 = vpop.f32.mrb[0].mxu0
    %v377 = vadd.f32 0.0, %v376
    %v378 = vpop.f32.mrb[0].mxu0
    %379 = vmatprep.mubr.f32.mxu0 0.0
    %380 = vmatmul.mubr.f32.gmra.mrb[0].mxu0 %v45
    %v381 = vpop.f32.mrb[0].mxu0
    %v382 = vadd.f32 0.0, %v381
    %v383 = vpop.f32.mrb[0].mxu0
    %384 = vmatprep.mubr.f32.mxu0 0.0
    %385 = vmatmul.mubr.f32.gmra.mrb[0].mxu0 %v48
    %v386 = vpop.f32.mrb[0].mxu0
    %v387 = vadd.f32 0.0, %v386
    %v388 = vpop.f32.mrb[0].mxu0
    %389 = vdwg.mxu0
    %390 = vmatprep.subr.mxu0 0.0
    %391 = vmatpush1.msra.mxu0 %v23
    %392 = vmatprep.subr.mxu0 0.0
    %393 = vmatpush1.msra.mxu0 %v24
    %394 = vmatprep.subr.mxu0 0.0
    %395 = vmatpush1.msra.mxu0 0.0
    %396 = vmatprep.subr.mxu0 0.0
    %397 = vmatpush1.msra.mxu0 0.0
    %398 = vmatprep.subr.mxu0 0.0
    %399 = vmatpush1.msra.mxu0 0.0
    %400 = vmatprep.subr.mxu0 0.0
    %401 = vmatpush1.msra.mxu0 0.0
    %402 = vmatprep.subr.mxu0 0.0
    %403 = vmatpush1.msra.mxu0 0.0
    %404 = vmatprep.subr.mxu0 0.0
    %405 = vmatpush1.msra.mxu0 0.0
    %406 = vmatprep.subr.mxu0 0.0
    %407 = vmatpush1.msra.mxu0 0.0
    %408 = vmatprep.subr.mxu0 0.0
    %409 = vmatpush1.msra.mxu0 0.0
    %410 = vmatprep.subr.mxu0 0.0
    %411 = vmatpush1.msra.mxu0 0.0
    %412 = vmatprep.subr.mxu0 0.0
    %413 = vmatpush1.msra.mxu0 0.0
    %414 = vmatprep.subr.mxu0 0.0
    %415 = vmatpush1.msra.mxu0 0.0
    %416 = vmatprep.subr.mxu0 0.0
    %417 = vmatpush1.msra.mxu0 0.0
    %418 = vmatprep.subr.mxu0 0.0
    %419 = vmatpush1.msra.mxu0 0.0
    %420 = vmatprep.subr.mxu0 0.0
    %421 = vmatpush1.msra.mxu0 0.0
    %422 = vmatprep.subr.mxu0 0.0
    %423 = vmatpush1.msra.mxu0 0.0
    %424 = vmatprep.subr.mxu0 0.0
    %425 = vmatpush1.msra.mxu0 0.0
    %426 = vmatprep.subr.mxu0 0.0
    %427 = vmatpush1.msra.mxu0 0.0
    %428 = vmatprep.subr.mxu0 0.0
    %429 = vmatpush1.msra.mxu0 0.0
    %430 = vmatprep.subr.mxu0 0.0
    %431 = vmatpush1.msra.mxu0 0.0
    %432 = vmatprep.subr.mxu0 0.0
    %433 = vmatpush1.msra.mxu0 0.0
    %434 = vmatprep.subr.mxu0 0.0
    %435 = vmatpush1.msra.mxu0 0.0
    %436 = vmatprep.subr.mxu0 0.0
    %437 = vmatpush1.msra.mxu0 0.0
    %438 = vmatprep.subr.mxu0 0.0
    %439 = vmatpush1.msra.mxu0 0.0
    %440 = vmatprep.subr.mxu0 0.0
    %441 = vmatpush1.msra.mxu0 0.0
    %442 = vmatprep.subr.mxu0 0.0
    %443 = vmatpush1.msra.mxu0 0.0
    %444 = vmatprep.subr.mxu0 0.0
    %445 = vmatpush1.msra.mxu0 0.0
    %446 = vmatprep.subr.mxu0 0.0
    %447 = vmatpush1.msra.mxu0 0.0
    %448 = vmatprep.subr.mxu0 0.0
    %449 = vmatpush1.msra.mxu0 0.0
    %450 = vmatprep.subr.mxu0 0.0
    %451 = vmatpush1.msra.mxu0 0.0
    %452 = vmatprep.subr.mxu0 0.0
    %453 = vmatpush1.msra.mxu0 0.0
    %454 = vmatprep.mubr.f32.mxu0 0.0
    %455 = vmatmul.mubr.f32.gmra.mrb[0].mxu0 %v39
    %v456 = vpop.f32.mrb[0].mxu0
    %v457 = vadd.f32 0.0, %v456
    %v458 = vpop.f32.mrb[0].mxu0
    %459 = vmatprep.mubr.f32.mxu0 0.0
    %460 = vmatmul.mubr.f32.gmra.mrb[0].mxu0 %v42
    %v461 = vpop.f32.mrb[0].mxu0
    %v462 = vadd.f32 0.0, %v461
    %v463 = vpop.f32.mrb[0].mxu0
    %464 = vmatprep.mubr.f32.mxu0 0.0
    %465 = vmatmul.mubr.f32.gmra.mrb[0].mxu0 %v45
    %v466 = vpop.f32.mrb[0].mxu0
    %v467 = vadd.f32 0.0, %v466
    %v468 = vpop.f32.mrb[0].mxu0
    %469 = vmatprep.mubr.f32.mxu0 0.0
    %470 = vmatmul.mubr.f32.gmra.mrb[0].mxu0 %v48
    %v471 = vpop.f32.mrb[0].mxu0
    %v472 = vadd.f32 0.0, %v471
    %v473 = vpop.f32.mrb[0].mxu0
    %474 = vdwg.mxu0
    %475 = vmatprep.subr.mxu0 0.0
    %476 = vmatpush1.msra.mxu0 %v25
    %477 = vmatprep.subr.mxu0 0.0
    %478 = vmatpush1.msra.mxu0 %v26
    %479 = vmatprep.subr.mxu0 0.0
    %480 = vmatpush1.msra.mxu0 0.0
    %481 = vmatprep.subr.mxu0 0.0
    %482 = vmatpush1.msra.mxu0 0.0
    %483 = vmatprep.subr.mxu0 0.0
    %484 = vmatpush1.msra.mxu0 0.0
    %485 = vmatprep.subr.mxu0 0.0
    %486 = vmatpush1.msra.mxu0 0.0
    %487 = vmatprep.subr.mxu0 0.0
    %488 = vmatpush1.msra.mxu0 0.0
    %489 = vmatprep.subr.mxu0 0.0
    %490 = vmatpush1.msra.mxu0 0.0
    %491 = vmatprep.subr.mxu0 0.0
    %492 = vmatpush1.msra.mxu0 0.0
    %493 = vmatprep.subr.mxu0 0.0
    %494 = vmatpush1.msra.mxu0 0.0
    %495 = vmatprep.subr.mxu0 0.0
    %496 = vmatpush1.msra.mxu0 0.0
    %497 = vmatprep.subr.mxu0 0.0
    %498 = vmatpush1.msra.mxu0 0.0
    %499 = vmatprep.subr.mxu0 0.0
    %500 = vmatpush1.msra.mxu0 0.0
    %501 = vmatprep.subr.mxu0 0.0
    %502 = vmatpush1.msra.mxu0 0.0
    %503 = vmatprep.subr.mxu0 0.0
    %504 = vmatpush1.msra.mxu0 0.0
    %505 = vmatprep.subr.mxu0 0.0
    %506 = vmatpush1.msra.mxu0 0.0
    %507 = vmatprep.subr.mxu0 0.0
    %508 = vmatpush1.msra.mxu0 0.0
    %509 = vmatprep.subr.mxu0 0.0
    %510 = vmatpush1.msra.mxu0 0.0
    %511 = vmatprep.subr.mxu0 0.0
    %512 = vmatpush1.msra.mxu0 0.0
    %513 = vmatprep.subr.mxu0 0.0
    %514 = vmatpush1.msra.mxu0 0.0
    %515 = vmatprep.subr.mxu0 0.0
    %516 = vmatpush1.msra.mxu0 0.0
    %517 = vmatprep.subr.mxu0 0.0
    %518 = vmatpush1.msra.mxu0 0.0
    %519 = vmatprep.subr.mxu0 0.0
    %520 = vmatpush1.msra.mxu0 0.0
    %521 = vmatprep.subr.mxu0 0.0
    %522 = vmatpush1.msra.mxu0 0.0
    %523 = vmatprep.subr.mxu0 0.0
    %524 = vmatpush1.msra.mxu0 0.0
    %525 = vmatprep.subr.mxu0 0.0
    %526 = vmatpush1.msra.mxu0 0.0
    %527 = vmatprep.subr.mxu0 0.0
    %528 = vmatpush1.msra.mxu0 0.0
    %529 = vmatprep.subr.mxu0 0.0
    %530 = vmatpush1.msra.mxu0 0.0
    %531 = vmatprep.subr.mxu0 0.0
    %532 = vmatpush1.msra.mxu0 0.0
    %533 = vmatprep.subr.mxu0 0.0
    %534 = vmatpush1.msra.mxu0 0.0
    %535 = vmatprep.subr.mxu0 0.0
    %536 = vmatpush1.msra.mxu0 0.0
    %537 = vmatprep.subr.mxu0 0.0
    %538 = vmatpush1.msra.mxu0 0.0
    %539 = vmatprep.mubr.f32.mxu0 0.0
    %540 = vmatmul.mubr.f32.gmra.mrb[0].mxu0 %v39
    %v541 = vpop.f32.mrb[0].mxu0
    %v542 = vadd.f32 0.0, %v541
    %v543 = vpop.f32.mrb[0].mxu0
    %544 = vmatprep.mubr.f32.mxu0 0.0
    %545 = vmatmul.mubr.f32.gmra.mrb[0].mxu0 %v42
    %v546 = vpop.f32.mrb[0].mxu0
    %v547 = vadd.f32 0.0, %v546
    %v548 = vpop.f32.mrb[0].mxu0
    %549 = vmatprep.mubr.f32.mxu0 0.0
    %550 = vmatmul.mubr.f32.gmra.mrb[0].mxu0 %v45
    %v551 = vpop.f32.mrb[0].mxu0
    %v552 = vadd.f32 0.0, %v551
    %v553 = vpop.f32.mrb[0].mxu0
    %554 = vmatprep.mubr.f32.mxu0 0.0
    %555 = vmatmul.mubr.f32.gmra.mrb[0].mxu0 %v48
    %v556 = vpop.f32.mrb[0].mxu0
    %v557 = vadd.f32 0.0, %v556
    %v558 = vpop.f32.mrb[0].mxu0
    %559 = vdwg.mxu0
    %560 = vmatprep.subr.mxu0 0.0
    %561 = vmatpush1.msra.mxu0 %v27
    %562 = vmatprep.subr.mxu0 0.0
    %563 = vmatpush1.msra.mxu0 %v28
    %564 = vmatprep.subr.mxu0 0.0
    %565 = vmatpush1.msra.mxu0 0.0
    %566 = vmatprep.subr.mxu0 0.0
    %567 = vmatpush1.msra.mxu0 0.0
    %568 = vmatprep.subr.mxu0 0.0
    %569 = vmatpush1.msra.mxu0 0.0
    %570 = vmatprep.subr.mxu0 0.0
    %571 = vmatpush1.msra.mxu0 0.0
    %572 = vmatprep.subr.mxu0 0.0
    %573 = vmatpush1.msra.mxu0 0.0
    %574 = vmatprep.subr.mxu0 0.0
    %575 = vmatpush1.msra.mxu0 0.0
    %576 = vmatprep.subr.mxu0 0.0
    %577 = vmatpush1.msra.mxu0 0.0
    %578 = vmatprep.subr.mxu0 0.0
    %579 = vmatpush1.msra.mxu0 0.0
    %580 = vmatprep.subr.mxu0 0.0
    %581 = vmatpush1.msra.mxu0 0.0
    %582 = vmatprep.subr.mxu0 0.0
    %583 = vmatpush1.msra.mxu0 0.0
    %584 = vmatprep.subr.mxu0 0.0
    %585 = vmatpush1.msra.mxu0 0.0
    %586 = vmatprep.subr.mxu0 0.0
    %587 = vmatpush1.msra.mxu0 0.0
    %588 = vmatprep.subr.mxu0 0.0
    %589 = vmatpush1.msra.mxu0 0.0
    %590 = vmatprep.subr.mxu0 0.0
    %591 = vmatpush1.msra.mxu0 0.0
    %592 = vmatprep.subr.mxu0 0.0
    %593 = vmatpush1.msra.mxu0 0.0
    %594 = vmatprep.subr.mxu0 0.0
    %595 = vmatpush1.msra.mxu0 0.0
    %596 = vmatprep.subr.mxu0 0.0
    %597 = vmatpush1.msra.mxu0 0.0
    %598 = vmatprep.subr.mxu0 0.0
    %599 = vmatpush1.msra.mxu0 0.0
    %600 = vmatprep.subr.mxu0 0.0
    %601 = vmatpush1.msra.mxu0 0.0
    %602 = vmatprep.subr.mxu0 0.0
    %603 = vmatpush1.msra.mxu0 0.0
    %604 = vmatprep.subr.mxu0 0.0
    %605 = vmatpush1.msra.mxu0 0.0
    %606 = vmatprep.subr.mxu0 0.0
    %607 = vmatpush1.msra.mxu0 0.0
    %608 = vmatprep.subr.mxu0 0.0
    %609 = vmatpush1.msra.mxu0 0.0
    %610 = vmatprep.subr.mxu0 0.0
    %611 = vmatpush1.msra.mxu0 0.0
    %612 = vmatprep.subr.mxu0 0.0
    %613 = vmatpush1.msra.mxu0 0.0
    %614 = vmatprep.subr.mxu0 0.0
    %615 = vmatpush1.msra.mxu0 0.0
    %616 = vmatprep.subr.mxu0 0.0
    %617 = vmatpush1.msra.mxu0 0.0
    %618 = vmatprep.subr.mxu0 0.0
    %619 = vmatpush1.msra.mxu0 0.0
    %620 = vmatprep.subr.mxu0 0.0
    %621 = vmatpush1.msra.mxu0 0.0
    %622 = vmatprep.subr.mxu0 0.0
    %623 = vmatpush1.msra.mxu0 0.0
    %624 = vmatprep.mubr.f32.mxu0 0.0
    %625 = vmatmul.mubr.f32.gmra.mrb[0].mxu0 %v39
    %v626 = vpop.f32.mrb[0].mxu0
    %v627 = vadd.f32 0.0, %v626
    %v628 = vpop.f32.mrb[0].mxu0
    %629 = vmatprep.mubr.f32.mxu0 0.0
    %630 = vmatmul.mubr.f32.gmra.mrb[0].mxu0 %v42
    %v631 = vpop.f32.mrb[0].mxu0
    %v632 = vadd.f32 0.0, %v631
    %v633 = vpop.f32.mrb[0].mxu0
    %634 = vmatprep.mubr.f32.mxu0 0.0
    %635 = vmatmul.mubr.f32.gmra.mrb[0].mxu0 %v45
    %v636 = vpop.f32.mrb[0].mxu0
    %v637 = vadd.f32 0.0, %v636
    %v638 = vpop.f32.mrb[0].mxu0
    %639 = vmatprep.mubr.f32.mxu0 0.0
    %640 = vmatmul.mubr.f32.gmra.mrb[0].mxu0 %v48
    %v641 = vpop.f32.mrb[0].mxu0
    %v642 = vadd.f32 0.0, %v641
    %v643 = vpop.f32.mrb[0].mxu0
    %644 = vdwg.mxu0
    %645 = vmatprep.subr.mxu0 0.0
    %646 = vmatpush1.msra.mxu0 %v29
    %647 = vmatprep.subr.mxu0 0.0
    %648 = vmatpush1.msra.mxu0 %v30
    %649 = vmatprep.subr.mxu0 0.0
    %650 = vmatpush1.msra.mxu0 0.0
    %651 = vmatprep.subr.mxu0 0.0
    %652 = vmatpush1.msra.mxu0 0.0
    %653 = vmatprep.subr.mxu0 0.0
    %654 = vmatpush1.msra.mxu0 0.0
    %655 = vmatprep.subr.mxu0 0.0
    %656 = vmatpush1.msra.mxu0 0.0
    %657 = vmatprep.subr.mxu0 0.0
    %658 = vmatpush1.msra.mxu0 0.0
    %659 = vmatprep.subr.mxu0 0.0
    %660 = vmatpush1.msra.mxu0 0.0
    %661 = vmatprep.subr.mxu0 0.0
    %662 = vmatpush1.msra.mxu0 0.0
    %663 = vmatprep.subr.mxu0 0.0
    %664 = vmatpush1.msra.mxu0 0.0
    %665 = vmatprep.subr.mxu0 0.0
    %666 = vmatpush1.msra.mxu0 0.0
    %667 = vmatprep.subr.mxu0 0.0
    %668 = vmatpush1.msra.mxu0 0.0
    %669 = vmatprep.subr.mxu0 0.0
    %670 = vmatpush1.msra.mxu0 0.0
    %671 = vmatprep.subr.mxu0 0.0
    %672 = vmatpush1.msra.mxu0 0.0
    %673 = vmatprep.subr.mxu0 0.0
    %674 = vmatpush1.msra.mxu0 0.0
    %675 = vmatprep.subr.mxu0 0.0
    %676 = vmatpush1.msra.mxu0 0.0
    %677 = vmatprep.subr.mxu0 0.0
    %678 = vmatpush1.msra.mxu0 0.0
    %679 = vmatprep.subr.mxu0 0.0
    %680 = vmatpush1.msra.mxu0 0.0
    %681 = vmatprep.subr.mxu0 0.0
    %682 = vmatpush1.msra.mxu0 0.0
    %683 = vmatprep.subr.mxu0 0.0
    %684 = vmatpush1.msra.mxu0 0.0
    %685 = vmatprep.subr.mxu0 0.0
    %686 = vmatpush1.msra.mxu0 0.0
    %687 = vmatprep.subr.mxu0 0.0
    %688 = vmatpush1.msra.mxu0 0.0
    %689 = vmatprep.subr.mxu0 0.0
    %690 = vmatpush1.msra.mxu0 0.0
    %691 = vmatprep.subr.mxu0 0.0
    %692 = vmatpush1.msra.mxu0 0.0
    %693 = vmatprep.subr.mxu0 0.0
    %694 = vmatpush1.msra.mxu0 0.0
    %695 = vmatprep.subr.mxu0 0.0
    %696 = vmatpush1.msra.mxu0 0.0
    %697 = vmatprep.subr.mxu0 0.0
    %698 = vmatpush1.msra.mxu0 0.0
    %699 = vmatprep.subr.mxu0 0.0
    %700 = vmatpush1.msra.mxu0 0.0
    %701 = vmatprep.subr.mxu0 0.0
    %702 = vmatpush1.msra.mxu0 0.0
    %703 = vmatprep.subr.mxu0 0.0
    %704 = vmatpush1.msra.mxu0 0.0
    %705 = vmatprep.subr.mxu0 0.0
    %706 = vmatpush1.msra.mxu0 0.0
    %707 = vmatprep.subr.mxu0 0.0
    %708 = vmatpush1.msra.mxu0 0.0
    %709 = vmatprep.mubr.f32.mxu0 0.0
    %710 = vmatmul.mubr.f32.gmra.mrb[0].mxu0 %v39
    %v711 = vpop.f32.mrb[0].mxu0
    %v712 = vadd.f32 0.0, %v711
    %v713 = vpop.f32.mrb[0].mxu0
    %714 = vmatprep.mubr.f32.mxu0 0.0
    %715 = vmatmul.mubr.f32.gmra.mrb[0].mxu0 %v42
    %v716 = vpop.f32.mrb[0].mxu0
    %v717 = vadd.f32 0.0, %v716
    %v718 = vpop.f32.mrb[0].mxu0
    %719 = vmatprep.mubr.f32.mxu0 0.0
    %720 = vmatmul.mubr.f32.gmra.mrb[0].mxu0 %v45
    %v721 = vpop.f32.mrb[0].mxu0
    %v722 = vadd.f32 0.0, %v721
    %v723 = vpop.f32.mrb[0].mxu0
    %724 = vmatprep.mubr.f32.mxu0 0.0
    %725 = vmatmul.mubr.f32.gmra.mrb[0].mxu0 %v48
    %v726 = vpop.f32.mrb[0].mxu0
    %v727 = vadd.f32 0.0, %v726
    %v728 = vpop.f32.mrb[0].mxu0
    %729 = vdwg.mxu0
    %v731 = vsel %vm37, %v117, 0
    %v734 = vsel %vm37, %v122, 0
    %v737 = vsel %vm37, %v127, 0
    %v740 = vsel %vm37, %v132, 0
    %v743 = vsel %vm37, %v202, 0
    %v746 = vsel %vm37, %v207, 0
    %v749 = vsel %vm37, %v212, 0
    %v752 = vsel %vm37, %v217, 0
    %v755 = vsel %vm37, %v287, 0
    %v758 = vsel %vm37, %v292, 0
    %v761 = vsel %vm37, %v297, 0
    %v764 = vsel %vm37, %v302, 0
    %v767 = vsel %vm37, %v372, 0
    %v770 = vsel %vm37, %v377, 0
    %v773 = vsel %vm37, %v382, 0
    %v776 = vsel %vm37, %v387, 0
    %v779 = vsel %vm37, %v457, 0
    %v782 = vsel %vm37, %v462, 0
    %v785 = vsel %vm37, %v467, 0
    %v788 = vsel %vm37, %v472, 0
    %v791 = vsel %vm37, %v542, 0
    %v794 = vsel %vm37, %v547, 0
    %v797 = vsel %vm37, %v552, 0
    %v800 = vsel %vm37, %v557, 0
    %v803 = vsel %vm37, %v627, 0
    %v806 = vsel %vm37, %v632, 0
    %v809 = vsel %vm37, %v637, 0
    %v812 = vsel %vm37, %v642, 0
    %v815 = vsel %vm37, %v712, 0
    %v818 = vsel %vm37, %v717, 0
    %v821 = vsel %vm37, %v722, 0
    %v824 = vsel %vm37, %v727, 0
    %826 = vmatprep.subr.mxu0 0.0
    %827 = vmatpush1.msra.mxu0 %v35
    %828 = vmatprep.subr.mxu0 0.0
    %829 = vmatpush1.msra.mxu0 %v36
    %830 = vmatprep.subr.mxu0 0.0
    %831 = vmatpush1.msra.mxu0 0.0
    %832 = vmatprep.subr.mxu0 0.0
    %833 = vmatpush1.msra.mxu0 0.0
    %834 = vmatprep.subr.mxu0 0.0
    %835 = vmatpush1.msra.mxu0 0.0
    %836 = vmatprep.subr.mxu0 0.0
    %837 = vmatpush1.msra.mxu0 0.0
    %838 = vmatprep.subr.mxu0 0.0
    %839 = vmatpush1.msra.mxu0 0.0
    %840 = vmatprep.subr.mxu0 0.0
    %841 = vmatpush1.msra.mxu0 0.0
    %842 = vmatprep.subr.mxu0 0.0
    %843 = vmatpush1.msra.mxu0 0.0
    %844 = vmatprep.subr.mxu0 0.0
    %845 = vmatpush1.msra.mxu0 0.0
    %846 = vmatprep.subr.mxu0 0.0
    %847 = vmatpush1.msra.mxu0 0.0
    %848 = vmatprep.subr.mxu0 0.0
    %849 = vmatpush1.msra.mxu0 0.0
    %850 = vmatprep.subr.mxu0 0.0
    %851 = vmatpush1.msra.mxu0 0.0
    %852 = vmatprep.subr.mxu0 0.0
    %853 = vmatpush1.msra.mxu0 0.0
    %854 = vmatprep.subr.mxu0 0.0
    %855 = vmatpush1.msra.mxu0 0.0
    %856 = vmatprep.subr.mxu0 0.0
    %857 = vmatpush1.msra.mxu0 0.0
    %858 = vmatprep.subr.mxu0 0.0
    %859 = vmatpush1.msra.mxu0 0.0
    %860 = vmatprep.subr.mxu0 0.0
    %861 = vmatpush1.msra.mxu0 0.0
    %862 = vmatprep.subr.mxu0 0.0
    %863 = vmatpush1.msra.mxu0 0.0
    %864 = vmatprep.subr.mxu0 0.0
    %865 = vmatpush1.msra.mxu0 0.0
    %866 = vmatprep.subr.mxu0 0.0
    %867 = vmatpush1.msra.mxu0 0.0
    %868 = vmatprep.subr.mxu0 0.0
    %869 = vmatpush1.msra.mxu0 0.0
    %870 = vmatprep.subr.mxu0 0.0
    %871 = vmatpush1.msra.mxu0 0.0
    %872 = vmatprep.subr.mxu0 0.0
    %873 = vmatpush1.msra.mxu0 0.0
    %874 = vmatprep.subr.mxu0 0.0
    %875 = vmatpush1.msra.mxu0 0.0
    %876 = vmatprep.subr.mxu0 0.0
    %877 = vmatpush1.msra.mxu0 0.0
    %878 = vmatprep.subr.mxu0 0.0
    %879 = vmatpush1.msra.mxu0 0.0
    %880 = vmatprep.subr.mxu0 0.0
    %881 = vmatpush1.msra.mxu0 0.0
    %882 = vmatprep.subr.mxu0 0.0
    %883 = vmatpush1.msra.mxu0 0.0
    %884 = vmatprep.subr.mxu0 0.0
    %885 = vmatpush1.msra.mxu0 0.0
    %886 = vmatprep.subr.mxu0 0.0
    %887 = vmatpush1.msra.mxu0 0.0
    %888 = vmatprep.subr.mxu0 0.0
    %889 = vmatpush1.msra.mxu0 0.0
    %890 = vmatprep.mubr.f32.mxu0 0.0
    %891 = vmatmul.mubr.f32.gmra.mrb[0].mxu0 %v731
    %v892 = vpop.f32.mrb[0].mxu0
    %v893 = vadd.f32 0.0, %v892
    %v894 = vpop.f32.mrb[0].mxu0
    %895 = vmatprep.mubr.f32.mxu0 0.0
    %896 = vmatmul.mubr.f32.gmra.mrb[0].mxu0 %v734
    %v897 = vpop.f32.mrb[0].mxu0
    %v898 = vadd.f32 0.0, %v897
    %v899 = vpop.f32.mrb[0].mxu0
    %900 = vmatprep.mubr.f32.mxu0 0.0
    %901 = vmatmul.mubr.f32.gmra.mrb[0].mxu0 %v737
    %v902 = vpop.f32.mrb[0].mxu0
    %v903 = vadd.f32 0.0, %v902
    %v904 = vpop.f32.mrb[0].mxu0
    %905 = vmatprep.mubr.f32.mxu0 0.0
    %906 = vmatmul.mubr.f32.gmra.mrb[0].mxu0 %v740
    %v907 = vpop.f32.mrb[0].mxu0
    %v908 = vadd.f32 0.0, %v907
    %v909 = vpop.f32.mrb[0].mxu0
    %910 = vmatprep.mubr.f32.mxu0 0.0
    %911 = vmatmul.mubr.f32.gmra.mrb[0].mxu0 %v743
    %v912 = vpop.f32.mrb[0].mxu0
    %v913 = vadd.f32 0.0, %v912
    %v914 = vpop.f32.mrb[0].mxu0
    %915 = vmatprep.mubr.f32.mxu0 0.0
    %916 = vmatmul.mubr.f32.gmra.mrb[0].mxu0 %v746
    %v917 = vpop.f32.mrb[0].mxu0
    %v918 = vadd.f32 0.0, %v917
    %v919 = vpop.f32.mrb[0].mxu0
    %920 = vmatprep.mubr.f32.mxu0 0.0
    %921 = vmatmul.mubr.f32.gmra.mrb[0].mxu0 %v749
    %v922 = vpop.f32.mrb[0].mxu0
    %v923 = vadd.f32 0.0, %v922
    %v924 = vpop.f32.mrb[0].mxu0
    %925 = vmatprep.mubr.f32.mxu0 0.0
    %926 = vmatmul.mubr.f32.gmra.mrb[0].mxu0 %v752
    %v927 = vpop.f32.mrb[0].mxu0
    %v928 = vadd.f32 0.0, %v927
    %v929 = vpop.f32.mrb[0].mxu0
    %930 = vmatprep.mubr.f32.mxu0 0.0
    %931 = vmatmul.mubr.f32.gmra.mrb[0].mxu0 %v755
    %v932 = vpop.f32.mrb[0].mxu0
    %v933 = vadd.f32 0.0, %v932
    %v934 = vpop.f32.mrb[0].mxu0
    %935 = vmatprep.mubr.f32.mxu0 0.0
    %936 = vmatmul.mubr.f32.gmra.mrb[0].mxu0 %v758
    %v937 = vpop.f32.mrb[0].mxu0
    %v938 = vadd.f32 0.0, %v937
    %v939 = vpop.f32.mrb[0].mxu0
    %940 = vmatprep.mubr.f32.mxu0 0.0
    %941 = vmatmul.mubr.f32.gmra.mrb[0].mxu0 %v761
    %v942 = vpop.f32.mrb[0].mxu0
    %v943 = vadd.f32 0.0, %v942
    %v944 = vpop.f32.mrb[0].mxu0
    %945 = vmatprep.mubr.f32.mxu0 0.0
    %946 = vmatmul.mubr.f32.gmra.mrb[0].mxu0 %v764
    %v947 = vpop.f32.mrb[0].mxu0
    %v948 = vadd.f32 0.0, %v947
    %v949 = vpop.f32.mrb[0].mxu0
    %950 = vmatprep.mubr.f32.mxu0 0.0
    %951 = vmatmul.mubr.f32.gmra.mrb[0].mxu0 %v767
    %v952 = vpop.f32.mrb[0].mxu0
    %v953 = vadd.f32 0.0, %v952
    %v954 = vpop.f32.mrb[0].mxu0
    %955 = vmatprep.mubr.f32.mxu0 0.0
    %956 = vmatmul.mubr.f32.gmra.mrb[0].mxu0 %v770
    %v957 = vpop.f32.mrb[0].mxu0
    %v958 = vadd.f32 0.0, %v957
    %v959 = vpop.f32.mrb[0].mxu0
    %960 = vmatprep.mubr.f32.mxu0 0.0
    %961 = vmatmul.mubr.f32.gmra.mrb[0].mxu0 %v773
    %v962 = vpop.f32.mrb[0].mxu0
    %v963 = vadd.f32 0.0, %v962
    %v964 = vpop.f32.mrb[0].mxu0
    %965 = vmatprep.mubr.f32.mxu0 0.0
    %966 = vmatmul.mubr.f32.gmra.mrb[0].mxu0 %v776
    %v967 = vpop.f32.mrb[0].mxu0
    %v968 = vadd.f32 0.0, %v967
    %v969 = vpop.f32.mrb[0].mxu0
    %970 = vmatprep.mubr.f32.mxu0 0.0
    %971 = vmatmul.mubr.f32.gmra.mrb[0].mxu0 %v779
    %v972 = vpop.f32.mrb[0].mxu0
    %v973 = vadd.f32 0.0, %v972
    %v974 = vpop.f32.mrb[0].mxu0
    %975 = vmatprep.mubr.f32.mxu0 0.0
    %976 = vmatmul.mubr.f32.gmra.mrb[0].mxu0 %v782
    %v977 = vpop.f32.mrb[0].mxu0
    %v978 = vadd.f32 0.0, %v977
    %v979 = vpop.f32.mrb[0].mxu0
    %980 = vmatprep.mubr.f32.mxu0 0.0
    %981 = vmatmul.mubr.f32.gmra.mrb[0].mxu0 %v785
    %v982 = vpop.f32.mrb[0].mxu0
    %v983 = vadd.f32 0.0, %v982
    %v984 = vpop.f32.mrb[0].mxu0
    %985 = vmatprep.mubr.f32.mxu0 0.0
    %986 = vmatmul.mubr.f32.gmra.mrb[0].mxu0 %v788
    %v987 = vpop.f32.mrb[0].mxu0
    %v988 = vadd.f32 0.0, %v987
    %v989 = vpop.f32.mrb[0].mxu0
    %990 = vmatprep.mubr.f32.mxu0 0.0
    %991 = vmatmul.mubr.f32.gmra.mrb[0].mxu0 %v791
    %v992 = vpop.f32.mrb[0].mxu0
    %v993 = vadd.f32 0.0, %v992
    %v994 = vpop.f32.mrb[0].mxu0
    %995 = vmatprep.mubr.f32.mxu0 0.0
    %996 = vmatmul.mubr.f32.gmra.mrb[0].mxu0 %v794
    %v997 = vpop.f32.mrb[0].mxu0
    %v998 = vadd.f32 0.0, %v997
    %v999 = vpop.f32.mrb[0].mxu0
    %1000 = vmatprep.mubr.f32.mxu0 0.0
    %1001 = vmatmul.mubr.f32.gmra.mrb[0].mxu0 %v797
    %v1002 = vpop.f32.mrb[0].mxu0
    %v1003 = vadd.f32 0.0, %v1002
    %v1004 = vpop.f32.mrb[0].mxu0
    %1005 = vmatprep.mubr.f32.mxu0 0.0
    %1006 = vmatmul.mubr.f32.gmra.mrb[0].mxu0 %v800
    %v1007 = vpop.f32.mrb[0].mxu0
    %v1008 = vadd.f32 0.0, %v1007
    %v1009 = vpop.f32.mrb[0].mxu0
    %1010 = vmatprep.mubr.f32.mxu0 0.0
    %1011 = vmatmul.mubr.f32.gmra.mrb[0].mxu0 %v803
    %v1012 = vpop.f32.mrb[0].mxu0
    %v1013 = vadd.f32 0.0, %v1012
    %v1014 = vpop.f32.mrb[0].mxu0
    %1015 = vmatprep.mubr.f32.mxu0 0.0
    %1016 = vmatmul.mubr.f32.gmra.mrb[0].mxu0 %v806
    %v1017 = vpop.f32.mrb[0].mxu0
    %v1018 = vadd.f32 0.0, %v1017
    %v1019 = vpop.f32.mrb[0].mxu0
    %1020 = vmatprep.mubr.f32.mxu0 0.0
    %1021 = vmatmul.mubr.f32.gmra.mrb[0].mxu0 %v809
    %v1022 = vpop.f32.mrb[0].mxu0
    %v1023 = vadd.f32 0.0, %v1022
    %v1024 = vpop.f32.mrb[0].mxu0
    %1025 = vmatprep.mubr.f32.mxu0 0.0
    %1026 = vmatmul.mubr.f32.gmra.mrb[0].mxu0 %v812
    %v1027 = vpop.f32.mrb[0].mxu0
    %v1028 = vadd.f32 0.0, %v1027
    %v1029 = vpop.f32.mrb[0].mxu0
    %1030 = vmatprep.mubr.f32.mxu0 0.0
    %1031 = vmatmul.mubr.f32.gmra.mrb[0].mxu0 %v815
    %v1032 = vpop.f32.mrb[0].mxu0
    %v1033 = vadd.f32 0.0, %v1032
    %v1034 = vpop.f32.mrb[0].mxu0
    %1035 = vmatprep.mubr.f32.mxu0 0.0
    %1036 = vmatmul.mubr.f32.gmra.mrb[0].mxu0 %v818
    %v1037 = vpop.f32.mrb[0].mxu0
    %v1038 = vadd.f32 0.0, %v1037
    %v1039 = vpop.f32.mrb[0].mxu0
    %1040 = vmatprep.mubr.f32.mxu0 0.0
    %1041 = vmatmul.mubr.f32.gmra.mrb[0].mxu0 %v821
    %v1042 = vpop.f32.mrb[0].mxu0
    %v1043 = vadd.f32 0.0, %v1042
    %v1044 = vpop.f32.mrb[0].mxu0
    %1045 = vmatprep.mubr.f32.mxu0 0.0
    %1046 = vmatmul.mubr.f32.gmra.mrb[0].mxu0 %v824
    %v1047 = vpop.f32.mrb[0].mxu0
    %v1048 = vadd.f32 0.0, %v1047
    %v1049 = vpop.f32.mrb[0].mxu0
    %1050 = vdwg.mxu0
    %vm1051 = vcmask 261120
    %1052 = vst.msk [vmem:[#allocation2] sm:$0xff] %vm1051, %v893
    %1053 = vst.msk [vmem:[#allocation2 + $0x8] sm:$0xff] %vm1051, %v898
    %1054 = vst.msk [vmem:[#allocation2 + $0x10] sm:$0xff] %vm1051, %v903
    %1055 = vst.msk [vmem:[#allocation2 + $0x18] sm:$0xff] %vm1051, %v908
    %1056 = vst.msk [vmem:[#allocation2 + $0x20] sm:$0xff] %vm1051, %v913
    %1057 = vst.msk [vmem:[#allocation2 + $0x28] sm:$0xff] %vm1051, %v918
    %1058 = vst.msk [vmem:[#allocation2 + $0x30] sm:$0xff] %vm1051, %v923
    %1059 = vst.msk [vmem:[#allocation2 + $0x38] sm:$0xff] %vm1051, %v928
    %1060 = vst.msk [vmem:[#allocation2 + $0x40] sm:$0xff] %vm1051, %v933
    %1061 = vst.msk [vmem:[#allocation2 + $0x48] sm:$0xff] %vm1051, %v938
    %1062 = vst.msk [vmem:[#allocation2 + $0x50] sm:$0xff] %vm1051, %v943
    %1063 = vst.msk [vmem:[#allocation2 + $0x58] sm:$0xff] %vm1051, %v948
    %1064 = vst.msk [vmem:[#allocation2 + $0x60] sm:$0xff] %vm1051, %v953
    %1065 = vst.msk [vmem:[#allocation2 + $0x68] sm:$0xff] %vm1051, %v958
    %1066 = vst.msk [vmem:[#allocation2 + $0x70] sm:$0xff] %vm1051, %v963
    %1067 = vst.msk [vmem:[#allocation2 + $0x78] sm:$0xff] %vm1051, %v968
    %1068 = vst.msk [vmem:[#allocation2 + $0x80] sm:$0xff] %vm1051, %v973
    %1069 = vst.msk [vmem:[#allocation2 + $0x88] sm:$0xff] %vm1051, %v978
    %1070 = vst.msk [vmem:[#allocation2 + $0x90] sm:$0xff] %vm1051, %v983
    %1071 = vst.msk [vmem:[#allocation2 + $0x98] sm:$0xff] %vm1051, %v988
    %1072 = vst.msk [vmem:[#allocation2 + $0xa0] sm:$0xff] %vm1051, %v993
    %1073 = vst.msk [vmem:[#allocation2 + $0xa8] sm:$0xff] %vm1051, %v998
    %1074 = vst.msk [vmem:[#allocation2 + $0xb0] sm:$0xff] %vm1051, %v1003
    %1075 = vst.msk [vmem:[#allocation2 + $0xb8] sm:$0xff] %vm1051, %v1008
    %1076 = vst.msk [vmem:[#allocation2 + $0xc0] sm:$0xff] %vm1051, %v1013
    %1077 = vst.msk [vmem:[#allocation2 + $0xc8] sm:$0xff] %vm1051, %v1018
    %1078 = vst.msk [vmem:[#allocation2 + $0xd0] sm:$0xff] %vm1051, %v1023
    %1079 = vst.msk [vmem:[#allocation2 + $0xd8] sm:$0xff] %vm1051, %v1028
    %1080 = vst.msk [vmem:[#allocation2 + $0xe0] sm:$0xff] %vm1051, %v1033
    %1081 = vst.msk [vmem:[#allocation2 + $0xe8] sm:$0xff] %vm1051, %v1038
    %1082 = vst.msk [vmem:[#allocation2 + $0xf0] sm:$0xff] %vm1051, %v1043
    %1083 = vst.msk [vmem:[#allocation2 + $0xf8] sm:$0xff] %vm1051, %v1048
    // Predicated region
    $region14: #{_forward_fused.3} parent=1 // pred_check
      _
    $region15: #{_forward_fused.3} parent=1 // pred_check_branch
      %1085 = sbr.rel (0) target = $region17
    $region16: #{_forward_fused.3} parent=1 // pred_region
      %s1087 = ssub.s32 4096, 4096
      %1088 = vsyncadd [#allocation3], %s1087
      %s1089 = sshll.u32 [#allocation2], 4
      %s1090 = int_to_ptr.vmem [resolvable:$true] %s1089
      %1095 = dma.vmem_to_hbm [thread:$0]  %s1090, 4096, %s3, [#allocation3], 128, 128, 8
    $region17: #{_forward_fused.3} parent=1 // pred_fallthru
      _
    // Predicated region
    $region18: #{_forward_fused.3} parent=1 // pred_check
      _
    $region19: #{_forward_fused.3} parent=1 // pred_check_branch
      %1097 = sbr.rel (0) target = $region21
    $region20: #{_forward_fused.3} parent=1 // pred_region
      %1098 = dma.done [#allocation3], 4096
    $region21: #{_forward_fused.3} parent=1 // pred_fallthru
      _
    %1099 = vsyncpa [#allocation3], 1

</llo_original>
